<compile_context>
chip_gen: v7x
topology: tpu7x:2x2x1
jax: 0.10.0
libtpu: 0.0.40
codegen_flags: <defaults>
</compile_context>

<pallas_src>
import math

import jax
import jax.numpy as jnp
from jax.experimental import pallas as pl
from jax.experimental.pallas import tpu as pltpu

K = 3            # kernel_size
PAD = K // 2     # 'same' padding


def _round_up(x, m):
    return ((x + m - 1) // m) * m


def _vmem_limit_bytes():
    # Generation-aware VMEM budget: leave headroom on 64 MiB parts (v7x),
    # use more of v5e/v6e's 128 MiB.
    cap = 128 * 1024 * 1024
    try:
        cap = int(getattr(pltpu.get_tpu_info(), "vmem_capacity_bytes", cap))
    except Exception:
        pass
    if cap <= 64 * 1024 * 1024:
        return 40 * 1024 * 1024
    return 96 * 1024 * 1024


def conv_block_kernel(x_ref, xhalo_ref, mask_ref, mhalo_ref,
                      w1_ref, b1_ref, w2_ref, b2_ref, out_ref):
    """One grid step = (batch b, time-tile j).

    x_ref    : (T_TILE, C)   input rows, original dtype (residual source)
    xhalo_ref: (K, 2, C)     x rows needed to recompute conv1 at the two halo
                             timesteps t0-1 and t0+T_TILE:
                               xhalo[k, 0] = x[t0 - 2 + k]
                               xhalo[k, 1] = x[t0 + T_TILE - 1 + k]
    mask_ref : (T_TILE, 1)   float mask
    mhalo_ref: (2, 1)        mask at t0-1 and t0+T_TILE
    w1_ref   : (K, C, W)     conv1 weights, tap-major
    b1_ref   : (1, W)
    w2_ref   : (K, W, C_out) conv2 weights, tap-major
    b2_ref   : (1, C_out)
    out_ref  : (T_TILE, C_out)
    """
    t_tile = out_ref.shape[0]
    cdt = w1_ref.dtype

    x = x_ref[...]                                  # original dtype
    xc = x.astype(cdt)
    m = mask_ref[...].astype(jnp.float32)           # (T_TILE, 1)
    xh = xhalo_ref[...]                             # (K, 2, C)
    mh = mhalo_ref[...].astype(jnp.float32)         # (2, 1)

    row = jax.lax.broadcasted_iota(jnp.int32, (t_tile, 1), 0)
    first = row == 0
    last = row == t_tile - 1

    # ---- conv1: build x[t-1] / x[t+1] with XLU rolls (non-negative shifts
    # only); tile-edge rows patched from the halo.  One MXU matmul per tap,
    # all accumulated in f32 — no lane-axis concat of shifted operands.
    x_m1 = jnp.where(first, xh[1, 0:1, :].astype(cdt),
                     pltpu.roll(xc, shift=1, axis=0))              # x[t-1]
    x_p1 = jnp.where(last, xh[1, 1:2, :].astype(cdt),
                     pltpu.roll(xc, shift=t_tile - 1, axis=0))     # x[t+1]

    h = jnp.dot(x_m1, w1_ref[0], preferred_element_type=jnp.float32)
    h = h + jnp.dot(xc, w1_ref[1], preferred_element_type=jnp.float32)
    h = h + jnp.dot(x_p1, w1_ref[2], preferred_element_type=jnp.float32)
    h = jnp.maximum((h + b1_ref[...]) * m, 0.0)                    # (T_TILE, W) f32

    # conv1 on the two halo rows (t = t0-1 and t = t0+T_TILE) needed by conv2
    # at the tile edges — recomputed in-tile from the tiny (K, 2, C) halo so
    # the main x stream stays a plain, non-overlapping Blocked stream.
    hh = jnp.dot(xh[0].astype(cdt), w1_ref[0], preferred_element_type=jnp.float32)
    hh = hh + jnp.dot(xh[1].astype(cdt), w1_ref[1], preferred_element_type=jnp.float32)
    hh = hh + jnp.dot(xh[2].astype(cdt), w1_ref[2], preferred_element_type=jnp.float32)
    hh = jnp.maximum((hh + b1_ref[...]) * mh, 0.0)                 # (2, W) f32

    # ---- conv2: same roll + edge-patch construction, per-tap matmuls.
    h_m1 = jnp.where(first, hh[0:1, :], pltpu.roll(h, shift=1, axis=0))
    h_p1 = jnp.where(last, hh[1:2, :], pltpu.roll(h, shift=t_tile - 1, axis=0))

    out = jnp.dot(h_m1.astype(cdt), w2_ref[0], preferred_element_type=jnp.float32)
    out = out + jnp.dot(h.astype(cdt), w2_ref[1], preferred_element_type=jnp.float32)
    out = out + jnp.dot(h_p1.astype(cdt), w2_ref[2], preferred_element_type=jnp.float32)
    out = (out + b2_ref[...]) * m
    # Identity residual (stride 1, n_out == n_embd), added from the
    # original-dtype x stream (full precision, matches the PyTorch reference).
    out = out + x.astype(jnp.float32)
    # NOTE: for c_out < 128 the store is a masked partial vst and the MXU N dim
    # is underfilled — acceptable for small configs, lane-dense for real C.
    out_ref[...] = jnp.maximum(out, 0.0).astype(out_ref.dtype)


def conv_block(x, mask, w1, b1, w2, b2, *, t_tile=512, compute_dtype=jnp.bfloat16):
    """Fused ConvBlock forward.

    x    : (B, T, C) float      mask : (B, T, 1) bool/float
    w1   : (K, C, W)  conv1 weight (tap-major; PyTorch (W, C, K) transposed)
    b1   : (W,)       w2 : (K, W, C)   b2 : (C,)
    compute_dtype : MXU operand dtype (default bf16; accumulation is f32,
                    mask / ReLU / residual math is f32).  None => x.dtype.
    Returns (out (B, T, C), out_mask (B, T, 1) bool).
    """
    B, T, C = x.shape
    k1, c_in, width = w1.shape
    assert k1 == K and c_in == C
    c_out = w2.shape[2]
    assert c_out == C, "identity residual requires n_out == n_embd"
    # TODO(synk): n_ds_stride > 1 (strided conv1 + 1x1 downsample residual) is
    # not implemented; ConvBlock defaults use stride 1 / identity residual.

    cdt = jnp.dtype(x.dtype if compute_dtype is None else compute_dtype)

    t_tile = max(8, min(_round_up(t_tile, 8), _round_up(T, 8)))
    # v7x has two TensorCores: when B == 1, split T into at least two tiles so
    # both cores get work under the "parallel" grid axes.
    if B == 1 and T > 8 and t_tile >= _round_up(T, 8):
        t_tile = max(8, _round_up(pl.cdiv(T, 2), 8))
    t_pad = _round_up(T, t_tile)
    n_t = t_pad // t_tile

    mask_f = mask.astype(jnp.float32)
    xp = jnp.pad(x, ((0, 0), (0, t_pad - T), (0, 0)))
    mp = jnp.pad(mask_f, ((0, 0), (0, t_pad - T), (0, 0)))
    # TODO(synk): if the mask is a prefix-length mask, scalar-prefetch per-batch
    # lengths (num_scalar_prefetch=1) and rebuild m in-kernel from iota to drop
    # the two lane-1 mask streams.

    # Per-tile halos (tiny: K*2 x-rows and 2 mask-rows per tile), zeros outside
    # [0, T):
    #   x_halo[b, j, k, 0] = x[j*t_tile - 2 + k]      (for conv1 at t = j*t_tile - 1)
    #   x_halo[b, j, k, 1] = x[(j+1)*t_tile - 1 + k]  (for conv1 at t = (j+1)*t_tile)
    xz = jnp.pad(xp, ((0, 0), (2, 2), (0, 0)))
    lo = jnp.stack([xz[:, k::t_tile][:, :n_t] for k in range(K)], axis=2)
    hi = jnp.stack([xz[:, t_tile + 1 + k::t_tile][:, :n_t] for k in range(K)], axis=2)
    x_halo = jnp.stack([lo, hi], axis=3)                           # (B, n_t, K, 2, C)

    mz = jnp.pad(mp, ((0, 0), (1, 1), (0, 0)))
    m_halo = jnp.stack(
        [mz[:, 0::t_tile][:, :n_t], mz[:, t_tile + 1::t_tile][:, :n_t]],
        axis=2)                                                    # (B, n_t, 2, 1)

    # Weights/biases stay tap-major; cast MXU operands to compute dtype.
    # TODO(synk): optional fp8 weight path for v7x (2x bf16 MXU throughput).
    w1c = w1.astype(cdt)                                           # (K, C, W)
    w2c = w2.astype(cdt)                                           # (K, W, C_out)
    b1_2d = b1.reshape(1, width).astype(jnp.float32)
    b2_2d = b2.reshape(1, c_out).astype(jnp.float32)

    flops = (2 * B * (t_pad + 2 * n_t) * K * C * width
             + 2 * B * t_pad * K * width * c_out)
    bytes_accessed = int(
        (xp.size + x_halo.size) * jnp.dtype(x.dtype).itemsize
        + (w1c.size + w2c.size) * cdt.itemsize
        + (mp.size + m_halo.size + b1_2d.size + b2_2d.size) * 4
        + B * t_pad * c_out * jnp.dtype(x.dtype).itemsize)

    def _const_spec(shape):
        # Grid-invariant: constant index_map => DMA'd once, VMEM-resident;
        # single-buffered to reclaim the useless second pipeline buffer.
        if len(shape) == 2:
            index_map = lambda b, j: (0, 0)
        else:
            index_map = lambda b, j: (0, 0, 0)
        return pl.BlockSpec(shape, index_map, pipeline_mode=pl.Buffered(1))

    out = pl.pallas_call(
        conv_block_kernel,
        out_shape=jax.ShapeDtypeStruct((B, t_pad, c_out), x.dtype),
        grid_spec=pltpu.PrefetchScalarGridSpec(
            num_scalar_prefetch=0,
            grid=(B, n_t),
            in_specs=[
                pl.BlockSpec((pl.Squeezed(), t_tile, C), lambda b, j: (b, j, 0)),
                pl.BlockSpec((pl.Squeezed(), pl.Squeezed(), K, 2, C),
                             lambda b, j: (b, j, 0, 0, 0)),
                pl.BlockSpec((pl.Squeezed(), t_tile, 1), lambda b, j: (b, j, 0)),
                pl.BlockSpec((pl.Squeezed(), pl.Squeezed(), 2, 1),
                             lambda b, j: (b, j, 0, 0)),
                _const_spec((K, C, width)),
                _const_spec((1, width)),
                _const_spec((K, width, c_out)),
                _const_spec((1, c_out)),
            ],
            out_specs=pl.BlockSpec((pl.Squeezed(), t_tile, c_out),
                                   lambda b, j: (b, j, 0)),
        ),
        compiler_params=pltpu.CompilerParams(
            dimension_semantics=("parallel", "parallel"),
            vmem_limit_bytes=_vmem_limit_bytes()),
        cost_estimate=pl.CostEstimate(flops=flops, transcendentals=0,
                                      bytes_accessed=bytes_accessed),
    )(xp, x_halo, mp, m_halo, w1c, b1_2d, w2c, b2_2d)

    out = out[:, :T]
    out_mask = mask.astype(jnp.bool_)   # stride == 1 => out_mask == input mask
    return out, out_mask


def _reference(x, mask, w1, b1, w2, b2):
    """Plain-JAX reference replicating ConvBlock.forward semantics."""
    B, T, C = x.shape

    def conv1d(inp, w, b):
        xp = jnp.pad(inp, ((0, 0), (PAD, PAD), (0, 0)))
        acc = b.reshape(1, 1, -1)
        for k in range(K):
            acc = acc + jnp.einsum('btc,cd->btd', xp[:, k:k + T, :], w[k])
        return acc

    m = mask.astype(x.dtype)
    out = conv1d(x, w1, b1) * m
    out = jnp.maximum(out, 0.0)
    out = conv1d(out, w2, b2) * m
    out = out + x
    return jnp.maximum(out, 0.0)


if __name__ == "__main__":
    key = jax.random.PRNGKey(0)
    B, T, n_embd = 2, 32, 8
    expansion_factor = 2
    width = n_embd * expansion_factor
    n_out = n_embd

    k_x, k_w1, k_b1, k_w2, k_b2 = jax.random.split(key, 5)
    x = jax.random.normal(k_x, (B, T, n_embd), dtype=jnp.float32)
    # mask: first t_valid timesteps valid per batch element
    t_valid = jnp.array([T, T // 2 + 3])
    mask = (jnp.arange(T)[None, :] < t_valid[:, None])[:, :, None]   # (B, T, 1) bool

    # Conv params. PyTorch Conv1d weight (out, in, K) stored tap-major as (K, in, out).
    w1 = jax.random.uniform(k_w1, (K, n_embd, width), jnp.float32,
                            minval=-1.0, maxval=1.0) / math.sqrt(K * n_embd)
    b1 = 0.1 * jax.random.normal(k_b1, (width,), jnp.float32)
    w2 = jax.random.uniform(k_w2, (K, width, n_out), jnp.float32,
                            minval=-1.0, maxval=1.0) / math.sqrt(K * width)
    b2 = 0.1 * jax.random.normal(k_b2, (n_out,), jnp.float32)

    ref = _reference(x, mask, w1, b1, w2, b2)

    # Tolerances cover the TPU's default (bf16-pass) matmul path.
    # 1) f32 operands, multiple time tiles -> exercises the halo/roll path.
    out, out_mask = conv_block(x, mask, w1, b1, w2, b2, t_tile=16,
                               compute_dtype=jnp.float32)
    out = jax.block_until_ready(out)
    out_mask = jax.block_until_ready(out_mask)
    assert out.shape == (B, T, n_out)
    assert out_mask.shape == (B, T, 1) and out_mask.dtype == jnp.bool_
    assert jnp.allclose(out, ref, atol=2e-2, rtol=2e-2), "f32 tiled mismatch"

    # 2) f32 operands, T not a multiple of t_tile -> exercises time padding.
    out2, _ = conv_block(x, mask, w1, b1, w2, b2, t_tile=24,
                         compute_dtype=jnp.float32)
    out2 = jax.block_until_ready(out2)
    assert jnp.allclose(out2, ref, atol=2e-2, rtol=2e-2), "f32 padded-tile mismatch"

    # 3) default bf16 MXU operands (f32 accumulation / elementwise), looser tol.
    out3, _ = conv_block(x, mask, w1, b1, w2, b2, t_tile=16)
    out3 = jax.block_until_ready(out3)
    assert jnp.allclose(out3, ref, atol=7e-2, rtol=7e-2), "bf16 mismatch"

    print("KERNEL_OK")
</pallas_src>

<mosaic_0001>
module attributes {stable_mosaic.version = 11 : i64} {
  func.func @conv_block_kernel(%arg0: i32, %arg1: i32, %arg2: memref<1x16x8xf32, #tpu.memory_space<vmem>>, %arg3: memref<1x1x3x2x8xf32, #tpu.memory_space<vmem>>, %arg4: memref<1x16x1xf32, #tpu.memory_space<vmem>>, %arg5: memref<1x1x2x1xf32, #tpu.memory_space<vmem>>, %arg6: memref<3x8x16xf32, #tpu.memory_space<vmem>>, %arg7: memref<1x16xf32, #tpu.memory_space<vmem>>, %arg8: memref<3x16x8xf32, #tpu.memory_space<vmem>>, %arg9: memref<1x8xf32, #tpu.memory_space<vmem>>, %arg10: memref<1x16x8xf32, #tpu.memory_space<vmem>>) attributes {dimension_semantics = [#tpu.dimension_semantics<parallel>, #tpu.dimension_semantics<parallel>], iteration_bounds = array<i64: 2, 2>, scalar_prefetch = 0 : i64, scratch_operands = 0 : i64, tpu.core_type = #tpu.core_type<tc>, window_params = [{transform_indices = @transform_0, window_bounds = array<i64: 1, 16, 8>}, {transform_indices = @transform_1, window_bounds = array<i64: 1, 1, 3, 2, 8>}, {transform_indices = @transform_2, window_bounds = array<i64: 1, 16, 1>}, {transform_indices = @transform_3, window_bounds = array<i64: 1, 1, 2, 1>}, {pipeline_mode = #tpu.pipeline_mode<synchronous>, transform_indices = @transform_4, window_bounds = array<i64: 3, 8, 16>}, {pipeline_mode = #tpu.pipeline_mode<synchronous>, transform_indices = @transform_5, window_bounds = array<i64: 1, 16>}, {pipeline_mode = #tpu.pipeline_mode<synchronous>, transform_indices = @transform_6, window_bounds = array<i64: 3, 16, 8>}, {pipeline_mode = #tpu.pipeline_mode<synchronous>, transform_indices = @transform_7, window_bounds = array<i64: 1, 8>}, {transform_indices = @transform_8, window_bounds = array<i64: 1, 16, 8>}]} {
    %c0 = arith.constant 0 : index
    %c0_0 = arith.constant 0 : index
    %c0_1 = arith.constant 0 : index
    %0 = vector.load %arg2[%c0, %c0_0, %c0_1] : memref<1x16x8xf32, #tpu.memory_space<vmem>>, vector<1x16x8xf32>
    %1 = vector.shape_cast %0 : vector<1x16x8xf32> to vector<16x8xf32>
    %c0_2 = arith.constant 0 : index
    %c0_3 = arith.constant 0 : index
    %c0_4 = arith.constant 0 : index
    %2 = vector.load %arg4[%c0_2, %c0_3, %c0_4] : memref<1x16x1xf32, #tpu.memory_space<vmem>>, vector<1x16x1xf32>
    %3 = vector.shape_cast %2 : vector<1x16x1xf32> to vector<16x1xf32>
    %c0_5 = arith.constant 0 : index
    %c0_6 = arith.constant 0 : index
    %c0_7 = arith.constant 0 : index
    %c0_8 = arith.constant 0 : index
    %c0_9 = arith.constant 0 : index
    %4 = vector.load %arg3[%c0_5, %c0_6, %c0_7, %c0_8, %c0_9] : memref<1x1x3x2x8xf32, #tpu.memory_space<vmem>>, vector<1x1x3x2x8xf32>
    %5 = vector.shape_cast %4 : vector<1x1x3x2x8xf32> to vector<3x2x8xf32>
    %c0_10 = arith.constant 0 : index
    %c0_11 = arith.constant 0 : index
    %c0_12 = arith.constant 0 : index
    %c0_13 = arith.constant 0 : index
    %6 = vector.load %arg5[%c0_10, %c0_11, %c0_12, %c0_13] : memref<1x1x2x1xf32, #tpu.memory_space<vmem>>, vector<1x1x2x1xf32>
    %7 = vector.shape_cast %6 : vector<1x1x2x1xf32> to vector<2x1xf32>
    %8 = tpu.iota {dimensions = array<i32: 0>} : vector<16x1xi32>
    %c0_i32 = arith.constant 0 : i32
    %9 = vector.broadcast %c0_i32 : i32 to vector<16x1xi32>
    %10 = arith.cmpi eq, %8, %9 : vector<16x1xi32>
    %c15_i32 = arith.constant 15 : i32
    %11 = vector.broadcast %c15_i32 : i32 to vector<16x1xi32>
    %12 = arith.cmpi eq, %8, %11 : vector<16x1xi32>
    %13 = vector.extract_strided_slice %5 {offsets = [1, 0, 0], sizes = [1, 1, 8], strides = [1, 1, 1]} : vector<3x2x8xf32> to vector<1x1x8xf32>
    %14 = vector.shape_cast %13 : vector<1x1x8xf32> to vector<1x8xf32>
    %c1_i32 = arith.constant 1 : i32
    %15 = tpu.dynamic_rotate %1 by %c1_i32 dim 0 : vector<16x8xf32>, i32 -> vector<16x8xf32>
    %16 = vector.shape_cast %10 : vector<16x1xi1> to vector<16x1xi1>
    %17 = vector.broadcast %16 : vector<16x1xi1> to vector<16x8xi1>
    %18 = vector.shape_cast %14 : vector<1x8xf32> to vector<1x8xf32>
    %19 = vector.broadcast %18 : vector<1x8xf32> to vector<16x8xf32>
    %20 = arith.select %17, %19, %15 : vector<16x8xi1>, vector<16x8xf32>
    %21 = vector.extract_strided_slice %5 {offsets = [1, 1, 0], sizes = [1, 1, 8], strides = [1, 1, 1]} : vector<3x2x8xf32> to vector<1x1x8xf32>
    %22 = vector.shape_cast %21 : vector<1x1x8xf32> to vector<1x8xf32>
    %c15_i32_14 = arith.constant 15 : i32
    %23 = tpu.dynamic_rotate %1 by %c15_i32_14 dim 0 : vector<16x8xf32>, i32 -> vector<16x8xf32>
    %24 = vector.shape_cast %12 : vector<16x1xi1> to vector<16x1xi1>
    %25 = vector.broadcast %24 : vector<16x1xi1> to vector<16x8xi1>
    %26 = vector.shape_cast %22 : vector<1x8xf32> to vector<1x8xf32>
    %27 = vector.broadcast %26 : vector<1x8xf32> to vector<16x8xf32>
    %28 = arith.select %25, %27, %23 : vector<16x8xi1>, vector<16x8xf32>
    %c0_15 = arith.constant 0 : index
    %c0_16 = arith.constant 0 : index
    %c0_17 = arith.constant 0 : index
    %29 = vector.load %arg6[%c0_15, %c0_16, %c0_17] : memref<3x8x16xf32, #tpu.memory_space<vmem>>, vector<1x8x16xf32>
    %30 = vector.shape_cast %29 : vector<1x8x16xf32> to vector<8x16xf32>
    %cst = arith.constant dense<0.000000e+00> : vector<16x16xf32>
    %31 = tpu.matmul %20, %30, %cst {dimension_numbers = #tpu.dot_dimension_numbers<[1], [0], [0], [1], [0, 0, 1, 1], [], []>} : vector<16x8xf32>, vector<8x16xf32>, vector<16x16xf32> -> vector<16x16xf32>
    %c1 = arith.constant 1 : index
    %c0_18 = arith.constant 0 : index
    %c0_19 = arith.constant 0 : index
    %32 = vector.load %arg6[%c1, %c0_18, %c0_19] : memref<3x8x16xf32, #tpu.memory_space<vmem>>, vector<1x8x16xf32>
    %33 = vector.shape_cast %32 : vector<1x8x16xf32> to vector<8x16xf32>
    %cst_20 = arith.constant dense<0.000000e+00> : vector<16x16xf32>
    %34 = tpu.matmul %1, %33, %cst_20 {dimension_numbers = #tpu.dot_dimension_numbers<[1], [0], [0], [1], [0, 0, 1, 1], [], []>} : vector<16x8xf32>, vector<8x16xf32>, vector<16x16xf32> -> vector<16x16xf32>
    %35 = arith.addf %31, %34 : vector<16x16xf32>
    %c2 = arith.constant 2 : index
    %c0_21 = arith.constant 0 : index
    %c0_22 = arith.constant 0 : index
    %36 = vector.load %arg6[%c2, %c0_21, %c0_22] : memref<3x8x16xf32, #tpu.memory_space<vmem>>, vector<1x8x16xf32>
    %37 = vector.shape_cast %36 : vector<1x8x16xf32> to vector<8x16xf32>
    %cst_23 = arith.constant dense<0.000000e+00> : vector<16x16xf32>
    %38 = tpu.matmul %28, %37, %cst_23 {dimension_numbers = #tpu.dot_dimension_numbers<[1], [0], [0], [1], [0, 0, 1, 1], [], []>} : vector<16x8xf32>, vector<8x16xf32>, vector<16x16xf32> -> vector<16x16xf32>
    %39 = arith.addf %35, %38 : vector<16x16xf32>
    %c0_24 = arith.constant 0 : index
    %c0_25 = arith.constant 0 : index
    %40 = vector.load %arg7[%c0_24, %c0_25] : memref<1x16xf32, #tpu.memory_space<vmem>>, vector<1x16xf32>
    %41 = vector.broadcast %40 : vector<1x16xf32> to vector<16x16xf32>
    %42 = arith.addf %39, %41 : vector<16x16xf32>
    %43 = vector.broadcast %3 : vector<16x1xf32> to vector<16x16xf32>
    %44 = arith.mulf %42, %43 : vector<16x16xf32>
    %cst_26 = arith.constant 0.000000e+00 : f32
    %45 = vector.broadcast %cst_26 : f32 to vector<16x16xf32>
    %46 = arith.maximumf %44, %45 : vector<16x16xf32>
    %47 = vector.extract_strided_slice %5 {offsets = [0, 0, 0], sizes = [1, 2, 8], strides = [1, 1, 1]} : vector<3x2x8xf32> to vector<1x2x8xf32>
    %48 = vector.shape_cast %47 : vector<1x2x8xf32> to vector<2x8xf32>
    %c0_27 = arith.constant 0 : index
    %c0_28 = arith.constant 0 : index
    %c0_29 = arith.constant 0 : index
    %49 = vector.load %arg6[%c0_27, %c0_28, %c0_29] : memref<3x8x16xf32, #tpu.memory_space<vmem>>, vector<1x8x16xf32>
    %50 = vector.shape_cast %49 : vector<1x8x16xf32> to vector<8x16xf32>
    %cst_30 = arith.constant dense<0.000000e+00> : vector<2x16xf32>
    %51 = tpu.matmul %48, %50, %cst_30 {dimension_numbers = #tpu.dot_dimension_numbers<[1], [0], [0], [1], [0, 0, 1, 1], [], []>} : vector<2x8xf32>, vector<8x16xf32>, vector<2x16xf32> -> vector<2x16xf32>
    %52 = vector.extract_strided_slice %5 {offsets = [1, 0, 0], sizes = [1, 2, 8], strides = [1, 1, 1]} : vector<3x2x8xf32> to vector<1x2x8xf32>
    %53 = vector.shape_cast %52 : vector<1x2x8xf32> to vector<2x8xf32>
    %c1_31 = arith.constant 1 : index
    %c0_32 = arith.constant 0 : index
    %c0_33 = arith.constant 0 : index
    %54 = vector.load %arg6[%c1_31, %c0_32, %c0_33] : memref<3x8x16xf32, #tpu.memory_space<vmem>>, vector<1x8x16xf32>
    %55 = vector.shape_cast %54 : vector<1x8x16xf32> to vector<8x16xf32>
    %cst_34 = arith.constant dense<0.000000e+00> : vector<2x16xf32>
    %56 = tpu.matmul %53, %55, %cst_34 {dimension_numbers = #tpu.dot_dimension_numbers<[1], [0], [0], [1], [0, 0, 1, 1], [], []>} : vector<2x8xf32>, vector<8x16xf32>, vector<2x16xf32> -> vector<2x16xf32>
    %57 = arith.addf %51, %56 : vector<2x16xf32>
    %58 = vector.extract_strided_slice %5 {offsets = [2, 0, 0], sizes = [1, 2, 8], strides = [1, 1, 1]} : vector<3x2x8xf32> to vector<1x2x8xf32>
    %59 = vector.shape_cast %58 : vector<1x2x8xf32> to vector<2x8xf32>
    %c2_35 = arith.constant 2 : index
    %c0_36 = arith.constant 0 : index
    %c0_37 = arith.constant 0 : index
    %60 = vector.load %arg6[%c2_35, %c0_36, %c0_37] : memref<3x8x16xf32, #tpu.memory_space<vmem>>, vector<1x8x16xf32>
    %61 = vector.shape_cast %60 : vector<1x8x16xf32> to vector<8x16xf32>
    %cst_38 = arith.constant dense<0.000000e+00> : vector<2x16xf32>
    %62 = tpu.matmul %59, %61, %cst_38 {dimension_numbers = #tpu.dot_dimension_numbers<[1], [0], [0], [1], [0, 0, 1, 1], [], []>} : vector<2x8xf32>, vector<8x16xf32>, vector<2x16xf32> -> vector<2x16xf32>
    %63 = arith.addf %57, %62 : vector<2x16xf32>
    %c0_39 = arith.constant 0 : index
    %c0_40 = arith.constant 0 : index
    %64 = vector.load %arg7[%c0_39, %c0_40] : memref<1x16xf32, #tpu.memory_space<vmem>>, vector<1x16xf32>
    %65 = vector.broadcast %64 : vector<1x16xf32> to vector<2x16xf32>
    %66 = arith.addf %63, %65 : vector<2x16xf32>
    %67 = vector.broadcast %7 : vector<2x1xf32> to vector<2x16xf32>
    %68 = arith.mulf %66, %67 : vector<2x16xf32>
    %cst_41 = arith.constant 0.000000e+00 : f32
    %69 = vector.broadcast %cst_41 : f32 to vector<2x16xf32>
    %70 = arith.maximumf %68, %69 : vector<2x16xf32>
    %71 = vector.extract_strided_slice %70 {offsets = [0, 0], sizes = [1, 16], strides = [1, 1]} : vector<2x16xf32> to vector<1x16xf32>
    %c1_i32_42 = arith.constant 1 : i32
    %72 = tpu.dynamic_rotate %46 by %c1_i32_42 dim 0 : vector<16x16xf32>, i32 -> vector<16x16xf32>
    %73 = vector.shape_cast %10 : vector<16x1xi1> to vector<16x1xi1>
    %74 = vector.broadcast %73 : vector<16x1xi1> to vector<16x16xi1>
    %75 = vector.shape_cast %71 : vector<1x16xf32> to vector<1x16xf32>
    %76 = vector.broadcast %75 : vector<1x16xf32> to vector<16x16xf32>
    %77 = arith.select %74, %76, %72 : vector<16x16xi1>, vector<16x16xf32>
    %78 = vector.extract_strided_slice %70 {offsets = [1, 0], sizes = [1, 16], strides = [1, 1]} : vector<2x16xf32> to vector<1x16xf32>
    %c15_i32_43 = arith.constant 15 : i32
    %79 = tpu.dynamic_rotate %46 by %c15_i32_43 dim 0 : vector<16x16xf32>, i32 -> vector<16x16xf32>
    %80 = vector.shape_cast %12 : vector<16x1xi1> to vector<16x1xi1>
    %81 = vector.broadcast %80 : vector<16x1xi1> to vector<16x16xi1>
    %82 = vector.shape_cast %78 : vector<1x16xf32> to vector<1x16xf32>
    %83 = vector.broadcast %82 : vector<1x16xf32> to vector<16x16xf32>
    %84 = arith.select %81, %83, %79 : vector<16x16xi1>, vector<16x16xf32>
    %c0_44 = arith.constant 0 : index
    %c0_45 = arith.constant 0 : index
    %c0_46 = arith.constant 0 : index
    %85 = vector.load %arg8[%c0_44, %c0_45, %c0_46] : memref<3x16x8xf32, #tpu.memory_space<vmem>>, vector<1x16x8xf32>
    %86 = vector.shape_cast %85 : vector<1x16x8xf32> to vector<16x8xf32>
    %cst_47 = arith.constant dense<0.000000e+00> : vector<16x8xf32>
    %87 = tpu.matmul %77, %86, %cst_47 {dimension_numbers = #tpu.dot_dimension_numbers<[1], [0], [0], [1], [0, 0, 1, 1], [], []>} : vector<16x16xf32>, vector<16x8xf32>, vector<16x8xf32> -> vector<16x8xf32>
    %c1_48 = arith.constant 1 : index
    %c0_49 = arith.constant 0 : index
    %c0_50 = arith.constant 0 : index
    %88 = vector.load %arg8[%c1_48, %c0_49, %c0_50] : memref<3x16x8xf32, #tpu.memory_space<vmem>>, vector<1x16x8xf32>
    %89 = vector.shape_cast %88 : vector<1x16x8xf32> to vector<16x8xf32>
    %cst_51 = arith.constant dense<0.000000e+00> : vector<16x8xf32>
    %90 = tpu.matmul %46, %89, %cst_51 {dimension_numbers = #tpu.dot_dimension_numbers<[1], [0], [0], [1], [0, 0, 1, 1], [], []>} : vector<16x16xf32>, vector<16x8xf32>, vector<16x8xf32> -> vector<16x8xf32>
    %91 = arith.addf %87, %90 : vector<16x8xf32>
    %c2_52 = arith.constant 2 : index
    %c0_53 = arith.constant 0 : index
    %c0_54 = arith.constant 0 : index
    %92 = vector.load %arg8[%c2_52, %c0_53, %c0_54] : memref<3x16x8xf32, #tpu.memory_space<vmem>>, vector<1x16x8xf32>
    %93 = vector.shape_cast %92 : vector<1x16x8xf32> to vector<16x8xf32>
    %cst_55 = arith.constant dense<0.000000e+00> : vector<16x8xf32>
    %94 = tpu.matmul %84, %93, %cst_55 {dimension_numbers = #tpu.dot_dimension_numbers<[1], [0], [0], [1], [0, 0, 1, 1], [], []>} : vector<16x16xf32>, vector<16x8xf32>, vector<16x8xf32> -> vector<16x8xf32>
    %95 = arith.addf %91, %94 : vector<16x8xf32>
    %c0_56 = arith.constant 0 : index
    %c0_57 = arith.constant 0 : index
    %96 = vector.load %arg9[%c0_56, %c0_57] : memref<1x8xf32, #tpu.memory_space<vmem>>, vector<1x8xf32>
    %97 = vector.broadcast %96 : vector<1x8xf32> to vector<16x8xf32>
    %98 = arith.addf %95, %97 : vector<16x8xf32>
    %99 = vector.broadcast %3 : vector<16x1xf32> to vector<16x8xf32>
    %100 = arith.mulf %98, %99 : vector<16x8xf32>
    %101 = arith.addf %100, %1 : vector<16x8xf32>
    %cst_58 = arith.constant 0.000000e+00 : f32
    %102 = vector.broadcast %cst_58 : f32 to vector<16x8xf32>
    %103 = arith.maximumf %101, %102 : vector<16x8xf32>
    %c0_59 = arith.constant 0 : index
    %c0_60 = arith.constant 0 : index
    %c0_61 = arith.constant 0 : index
    %104 = vector.load %arg10[%c0_59, %c0_60, %c0_61] : memref<1x16x8xf32, #tpu.memory_space<vmem>>, vector<1x16x8xf32>
    %105 = vector.shape_cast %104 : vector<1x16x8xf32> to vector<16x8xf32>
    %106 = vector.shape_cast %103 : vector<16x8xf32> to vector<1x16x8xf32>
    tpu.vector_store %arg10[%c0_59, %c0_60, %c0_61], %106 {strides = array<i32>} : memref<1x16x8xf32, #tpu.memory_space<vmem>>, vector<1x16x8xf32>,
    return
  }
  func.func @transform_0(%arg0: i32, %arg1: i32) -> (i32, i32, i32) {
    %c0_i32 = arith.constant 0 : i32
    %c0_i32_0 = arith.constant 0 : i32
    return %arg0, %arg1, %c0_i32 : i32, i32, i32
  }
  func.func @transform_1(%arg0: i32, %arg1: i32) -> (i32, i32, i32, i32, i32) {
    %c0_i32 = arith.constant 0 : i32
    %c0_i32_0 = arith.constant 0 : i32
    %c0_i32_1 = arith.constant 0 : i32
    %c0_i32_2 = arith.constant 0 : i32
    return %arg0, %arg1, %c0_i32, %c0_i32_0, %c0_i32_1 : i32, i32, i32, i32, i32
  }
  func.func @transform_2(%arg0: i32, %arg1: i32) -> (i32, i32, i32) {
    %c0_i32 = arith.constant 0 : i32
    %c0_i32_0 = arith.constant 0 : i32
    return %arg0, %arg1, %c0_i32 : i32, i32, i32
  }
  func.func @transform_3(%arg0: i32, %arg1: i32) -> (i32, i32, i32, i32) {
    %c0_i32 = arith.constant 0 : i32
    %c0_i32_0 = arith.constant 0 : i32
    %c0_i32_1 = arith.constant 0 : i32
    return %arg0, %arg1, %c0_i32, %c0_i32_0 : i32, i32, i32, i32
  }
  func.func @transform_4(%arg0: i32, %arg1: i32) -> (i32, i32, i32) {
    %c0_i32 = arith.constant 0 : i32
    %c0_i32_0 = arith.constant 0 : i32
    %c0_i32_1 = arith.constant 0 : i32
    %c0_i32_2 = arith.constant 0 : i32
    return %c0_i32, %c0_i32_0, %c0_i32_1 : i32, i32, i32
  }
  func.func @transform_5(%arg0: i32, %arg1: i32) -> (i32, i32) {
    %c0_i32 = arith.constant 0 : i32
    %c0_i32_0 = arith.constant 0 : i32
    %c0_i32_1 = arith.constant 0 : i32
    return %c0_i32, %c0_i32_0 : i32, i32
  }
  func.func @transform_6(%arg0: i32, %arg1: i32) -> (i32, i32, i32) {
    %c0_i32 = arith.constant 0 : i32
    %c0_i32_0 = arith.constant 0 : i32
    %c0_i32_1 = arith.constant 0 : i32
    %c0_i32_2 = arith.constant 0 : i32
    return %c0_i32, %c0_i32_0, %c0_i32_1 : i32, i32, i32
  }
  func.func @transform_7(%arg0: i32, %arg1: i32) -> (i32, i32) {
    %c0_i32 = arith.constant 0 : i32
    %c0_i32_0 = arith.constant 0 : i32
    %c0_i32_1 = arith.constant 0 : i32
    return %c0_i32, %c0_i32_0 : i32, i32
  }
  func.func @transform_8(%arg0: i32, %arg1: i32) -> (i32, i32, i32) {
    %c0_i32 = arith.constant 0 : i32
    %c0_i32_0 = arith.constant 0 : i32
    return %arg0, %arg1, %c0_i32 : i32, i32, i32
  }
}

</mosaic_0001>

<llo_original>
// kernel: tpu_custom_call.1
$region0: #{tpu_custom_call.1}
  #allocation0 [shape = 'u32[]', space=smem, size = 0x4, offset = 0x4, fixed_abs, tag = 'smem constant byte address 0x4 - core index']
  #allocation1 [shape = 'u32[144,128]{1,0:T(1,128)}', space=vmem, size = 0x12000, scoped, tag = 'internal scratch']
  %s0 = inlined_call_operand.hbm [shape: f32[2,32,8], index: 0, kind: input, shape index: {}]
  %s1 = inlined_call_operand.hbm [shape: f32[2,2,3,2,8], index: 1, kind: input, shape index: {}]
  %s2 = inlined_call_operand.hbm [shape: f32[2,32,1], index: 2, kind: input, shape index: {}]
  %s3 = inlined_call_operand.hbm [shape: f32[2,2,2,1], index: 3, kind: input, shape index: {}]
  %s4 = inlined_call_operand.hbm [shape: f32[3,8,16], index: 4, kind: input, shape index: {}]
  %s5 = inlined_call_operand.hbm [shape: f32[1,16], index: 5, kind: input, shape index: {}]
  %s6 = inlined_call_operand.hbm [shape: f32[3,16,8], index: 6, kind: input, shape index: {}]
  %s7 = inlined_call_operand.hbm [shape: f32[1,8], index: 7, kind: input, shape index: {}]
  %s8 = inlined_call_operand.hbm [shape: f32[2,32,8], index: 8, kind: output, shape index: {}]
  %s9 = sld [smem:[#allocation0]]
  $region97: #{tpu_custom_call.1} parent=0
    _
  %s11 = ssub.s32 1, %s9
  %s12 = scalar_select 0, %s11, %s9
  $region1: #{tpu_custom_call.1} parent=0
    #allocation2 [shape = 'u8[16384]{0}', space=vmem, size = 0x4000, scoped, tag = 'input window, operand 0']
    #allocation3 [shape = 's32[2]{0}', space=sflag, size = 0x8, scoped, tag = 'scoped memory for tpu_custom_call.1']
    #allocation4 [shape = 's32[2]{0}', space=sflag, size = 0x8, scoped, tag = 'scoped memory for tpu_custom_call.1']
    #allocation5 [shape = 'u8[6144]{0}', space=vmem, size = 0x1800, scoped, tag = 'input window, operand 1']
    #allocation6 [shape = 's32[2]{0}', space=sflag, size = 0x8, scoped, tag = 'scoped memory for tpu_custom_call.1']
    #allocation7 [shape = 'u8[16384]{0}', space=vmem, size = 0x4000, scoped, tag = 'input window, operand 2']
    #allocation8 [shape = 'u8[2048]{0}', space=vmem, size = 0x800, scoped, tag = 'input window, operand 3']
    #allocation9 [shape = 's32[2]{0}', space=sflag, size = 0x8, scoped, tag = 'scoped memory for tpu_custom_call.1']
    #allocation10 [shape = 'u8[12288]{0}', space=vmem, size = 0x3000, scoped, tag = 'input window, operand 4, single buffered']
    #allocation11 [shape = 'u8[512]{0}', space=vmem, size = 0x400, scoped, tag = 'input window, operand 5, single buffered']
    #allocation12 [shape = 's32[1]{0}', space=sflag, size = 0x4, scoped, tag = 'scoped memory for tpu_custom_call.1']
    #allocation13 [shape = 'u8[24576]{0}', space=vmem, size = 0x6000, scoped, tag = 'input window, operand 6, single buffered']
    #allocation14 [shape = 'u8[512]{0}', space=vmem, size = 0x400, scoped, tag = 'input window, operand 7, single buffered']
    #allocation15 [shape = 's32[1]{0}', space=sflag, size = 0x4, scoped, tag = 'scoped memory for tpu_custom_call.1']
    #allocation16 [shape = 'u8[16384]{0}', space=vmem, size = 0x4000, scoped, tag = 'output window, operand 0']
    %13 = vsyncpa [#allocation3], 0
    %s14 = scalar_lea.sflag [#allocation3], 1
    %15 = vsyncpa %s14, 0
    %16 = vsyncpa [#allocation6], 0
    %s17 = scalar_lea.sflag [#allocation6], 1
    %18 = vsyncpa %s17, 0
    %19 = vsyncpa [#allocation9], 0
    %s20 = scalar_lea.sflag [#allocation9], 1
    %21 = vsyncpa %s20, 0
    %22 = vsyncpa [#allocation12], 0
    %23 = vsyncpa [#allocation15], 0
    %24 = vsyncpa [#allocation4], 0
    %s25 = scalar_lea.sflag [#allocation4], 1
    %26 = vsyncpa %s25, 0
    loop: start=0, step=1, limit=6
    $region2: #{tpu_custom_call.1} parent=1 // loop_pre_header
      _
    $region3: #{tpu_custom_call.1} parent=1 // loop_header
      %s28 = sphi 0, %s32
      %p29 = scmp.ge.s32.totalorder %s28, 6
      %s35 = sphi 0, %s47
      %s36 = sphi 0, %s43
      %s37 = sphi 0, %s35
      %s38 = sphi 0, %s36
      %s39 = sphi 0, %s37
      %s40 = sphi 0, %s38
      %s52 = sphi 0, %s54
      %s55 = sphi 0, %s52
      %s56 = sphi 0, %s55
      %s72 = sphi 0, %s56
      %s80 = sphi 0, %s82
      %s83 = sphi 0, %s80
      %s84 = sphi 0, %s83
      %s100 = sphi 0, %s84
      %s108 = sphi 0, %s110
      %s111 = sphi 0, %s108
      %s112 = sphi 0, %s111
      %s128 = sphi 0, %s112
      %s136 = sphi 0, %s138
      %s139 = sphi 0, %s136
      %s140 = sphi 0, %s139
      %s156 = sphi 0, %s140
      %s160 = sphi 0, %s160
      %s162 = sphi 0, %s160
      %s163 = sphi 0, %s162
      %s177 = sphi 0, %s163
      %s181 = sphi 0, %s181
      %s183 = sphi 0, %s181
      %s184 = sphi 0, %s183
      %s198 = sphi 0, %s184
      %s202 = sphi 0, %s202
      %s204 = sphi 0, %s202
      %s205 = sphi 0, %s204
      %s219 = sphi 0, %s205
      %s223 = sphi 0, %s223
      %s225 = sphi 0, %s223
      %s226 = sphi 0, %s225
      %s240 = sphi 0, %s226
      %s248 = sphi 0, %s250
      %s251 = sphi 0, %s248
      %s252 = sphi 0, %s251
      %s268 = sphi 0, %s252
    $region4: #{tpu_custom_call.1} parent=1 // loop_header_branch
      %31 = sbr.rel (%p29) target = $region8
    $region5: #{tpu_custom_call.1} parent=1 // loop_body
      %s33 = ssub.s32 %s28, 1
      %s34 = ssub.s32 %s28, 2
      %s41 = sadd.s32 1, %s36
      %p42 = scmp.ge.s32.totalorder %s41, 2
      %s43 = scalar_select %p42, 0, %s41
      %s44 = sadd.s32 1, %s35
      %s45 = scalar_select %p42, %s44, %s35
      %p46 = scmp.ge.s32.totalorder %s45, 2
      %s47 = scalar_select %p46, 0, %s45
      %s48 = ssub.s32 %s35, %s47
      %s49 = ssub.s32 %s36, %s43
      %s50 = sor.u32 %s48, %s49
      %p51 = scmp.eq.s32.totalorder %s50, 0
      %s53 = sadd.s32 %s52, 1
      %s54 = scalar_select %p51, %s52, %s53
      %p57 = pneg %p51
      %p58 = scmp.eq.s32.totalorder %s28, 3
      %p59 = por %p57, %p58
      %p60 = scmp.ne.s32.totalorder %s52, %s55
      %p61 = scmp.eq.s32.totalorder %s28, 0
      %p62 = por %p60, %p61
      %p63 = scmp.ne.s32.totalorder %s52, %s55
      %p64 = scmp.eq.s32.totalorder %s33, 3
      %p65 = por %p63, %p64
      %p66 = scmp.ne.s32.totalorder %s55, %s56
      %p67 = scmp.eq.s32.totalorder %s33, 0
      %p68 = por %p66, %p67
      %p69 = scmp.ne.s32.totalorder %s55, %s56
      %p70 = scmp.eq.s32.totalorder %s34, 3
      %p71 = por %p69, %p70
      %p73 = scmp.ne.s32.totalorder %s56, %s72
      %p74 = scmp.eq.s32.totalorder %s34, 0
      %p75 = por %p73, %p74
      %s76 = ssub.s32 %s35, %s47
      %s77 = ssub.s32 %s36, %s43
      %s78 = sor.u32 %s76, %s77
      %p79 = scmp.eq.s32.totalorder %s78, 0
      %s81 = sadd.s32 %s80, 1
      %s82 = scalar_select %p79, %s80, %s81
      %p85 = pneg %p79
      %p86 = scmp.eq.s32.totalorder %s28, 3
      %p87 = por %p85, %p86
      %p88 = scmp.ne.s32.totalorder %s80, %s83
      %p89 = scmp.eq.s32.totalorder %s28, 0
      %p90 = por %p88, %p89
      %p91 = scmp.ne.s32.totalorder %s80, %s83
      %p92 = scmp.eq.s32.totalorder %s33, 3
      %p93 = por %p91, %p92
      %p94 = scmp.ne.s32.totalorder %s83, %s84
      %p95 = scmp.eq.s32.totalorder %s33, 0
      %p96 = por %p94, %p95
      %p97 = scmp.ne.s32.totalorder %s83, %s84
      %p98 = scmp.eq.s32.totalorder %s34, 3
      %p99 = por %p97, %p98
      %p101 = scmp.ne.s32.totalorder %s84, %s100
      %p102 = scmp.eq.s32.totalorder %s34, 0
      %p103 = por %p101, %p102
      %s104 = ssub.s32 %s35, %s47
      %s105 = ssub.s32 %s36, %s43
      %s106 = sor.u32 %s104, %s105
      %p107 = scmp.eq.s32.totalorder %s106, 0
      %s109 = sadd.s32 %s108, 1
      %s110 = scalar_select %p107, %s108, %s109
      %p113 = pneg %p107
      %p114 = scmp.eq.s32.totalorder %s28, 3
      %p115 = por %p113, %p114
      %p116 = scmp.ne.s32.totalorder %s108, %s111
      %p117 = scmp.eq.s32.totalorder %s28, 0
      %p118 = por %p116, %p117
      %p119 = scmp.ne.s32.totalorder %s108, %s111
      %p120 = scmp.eq.s32.totalorder %s33, 3
      %p121 = por %p119, %p120
      %p122 = scmp.ne.s32.totalorder %s111, %s112
      %p123 = scmp.eq.s32.totalorder %s33, 0
      %p124 = por %p122, %p123
      %p125 = scmp.ne.s32.totalorder %s111, %s112
      %p126 = scmp.eq.s32.totalorder %s34, 3
      %p127 = por %p125, %p126
      %p129 = scmp.ne.s32.totalorder %s112, %s128
      %p130 = scmp.eq.s32.totalorder %s34, 0
      %p131 = por %p129, %p130
      %s132 = ssub.s32 %s35, %s47
      %s133 = ssub.s32 %s36, %s43
      %s134 = sor.u32 %s132, %s133
      %p135 = scmp.eq.s32.totalorder %s134, 0
      %s137 = sadd.s32 %s136, 1
      %s138 = scalar_select %p135, %s136, %s137
      %p141 = pneg %p135
      %p142 = scmp.eq.s32.totalorder %s28, 3
      %p143 = por %p141, %p142
      %p144 = scmp.ne.s32.totalorder %s136, %s139
      %p145 = scmp.eq.s32.totalorder %s28, 0
      %p146 = por %p144, %p145
      %p147 = scmp.ne.s32.totalorder %s136, %s139
      %p148 = scmp.eq.s32.totalorder %s33, 3
      %p149 = por %p147, %p148
      %p150 = scmp.ne.s32.totalorder %s139, %s140
      %p151 = scmp.eq.s32.totalorder %s33, 0
      %p152 = por %p150, %p151
      %p153 = scmp.ne.s32.totalorder %s139, %s140
      %p154 = scmp.eq.s32.totalorder %s34, 3
      %p155 = por %p153, %p154
      %p157 = scmp.ne.s32.totalorder %s140, %s156
      %p158 = scmp.eq.s32.totalorder %s34, 0
      %p159 = por %p157, %p158
      %s161 = sadd.s32 %s160, 1
      %p164 = scmp.eq.s32.totalorder %s28, 3
      %p165 = scmp.ne.s32.totalorder %s160, %s162
      %p166 = scmp.eq.s32.totalorder %s28, 0
      %p167 = por %p165, %p166
      %p168 = scmp.ne.s32.totalorder %s160, %s162
      %p169 = scmp.eq.s32.totalorder %s33, 3
      %p170 = por %p168, %p169
      %p171 = scmp.ne.s32.totalorder %s162, %s163
      %p172 = scmp.eq.s32.totalorder %s33, 0
      %p173 = por %p171, %p172
      %p174 = scmp.ne.s32.totalorder %s162, %s163
      %p175 = scmp.eq.s32.totalorder %s34, 3
      %p176 = por %p174, %p175
      %p178 = scmp.ne.s32.totalorder %s163, %s177
      %p179 = scmp.eq.s32.totalorder %s34, 0
      %p180 = por %p178, %p179
      %s182 = sadd.s32 %s181, 1
      %p185 = scmp.eq.s32.totalorder %s28, 3
      %p186 = scmp.ne.s32.totalorder %s181, %s183
      %p187 = scmp.eq.s32.totalorder %s28, 0
      %p188 = por %p186, %p187
      %p189 = scmp.ne.s32.totalorder %s181, %s183
      %p190 = scmp.eq.s32.totalorder %s33, 3
      %p191 = por %p189, %p190
      %p192 = scmp.ne.s32.totalorder %s183, %s184
      %p193 = scmp.eq.s32.totalorder %s33, 0
      %p194 = por %p192, %p193
      %p195 = scmp.ne.s32.totalorder %s183, %s184
      %p196 = scmp.eq.s32.totalorder %s34, 3
      %p197 = por %p195, %p196
      %p199 = scmp.ne.s32.totalorder %s184, %s198
      %p200 = scmp.eq.s32.totalorder %s34, 0
      %p201 = por %p199, %p200
      %s203 = sadd.s32 %s202, 1
      %p206 = scmp.eq.s32.totalorder %s28, 3
      %p207 = scmp.ne.s32.totalorder %s202, %s204
      %p208 = scmp.eq.s32.totalorder %s28, 0
      %p209 = por %p207, %p208
      %p210 = scmp.ne.s32.totalorder %s202, %s204
      %p211 = scmp.eq.s32.totalorder %s33, 3
      %p212 = por %p210, %p211
      %p213 = scmp.ne.s32.totalorder %s204, %s205
      %p214 = scmp.eq.s32.totalorder %s33, 0
      %p215 = por %p213, %p214
      %p216 = scmp.ne.s32.totalorder %s204, %s205
      %p217 = scmp.eq.s32.totalorder %s34, 3
      %p218 = por %p216, %p217
      %p220 = scmp.ne.s32.totalorder %s205, %s219
      %p221 = scmp.eq.s32.totalorder %s34, 0
      %p222 = por %p220, %p221
      %s224 = sadd.s32 %s223, 1
      %p227 = scmp.eq.s32.totalorder %s28, 3
      %p228 = scmp.ne.s32.totalorder %s223, %s225
      %p229 = scmp.eq.s32.totalorder %s28, 0
      %p230 = por %p228, %p229
      %p231 = scmp.ne.s32.totalorder %s223, %s225
      %p232 = scmp.eq.s32.totalorder %s33, 3
      %p233 = por %p231, %p232
      %p234 = scmp.ne.s32.totalorder %s225, %s226
      %p235 = scmp.eq.s32.totalorder %s33, 0
      %p236 = por %p234, %p235
      %p237 = scmp.ne.s32.totalorder %s225, %s226
      %p238 = scmp.eq.s32.totalorder %s34, 3
      %p239 = por %p237, %p238
      %p241 = scmp.ne.s32.totalorder %s226, %s240
      %p242 = scmp.eq.s32.totalorder %s34, 0
      %p243 = por %p241, %p242
      %s244 = ssub.s32 %s35, %s47
      %s245 = ssub.s32 %s36, %s43
      %s246 = sor.u32 %s244, %s245
      %p247 = scmp.eq.s32.totalorder %s246, 0
      %s249 = sadd.s32 %s248, 1
      %s250 = scalar_select %p247, %s248, %s249
      %p253 = pneg %p247
      %p254 = scmp.eq.s32.totalorder %s28, 3
      %p255 = por %p253, %p254
      %p256 = scmp.ne.s32.totalorder %s248, %s251
      %p257 = scmp.eq.s32.totalorder %s28, 0
      %p258 = por %p256, %p257
      %p259 = scmp.ne.s32.totalorder %s248, %s251
      %p260 = scmp.eq.s32.totalorder %s33, 3
      %p261 = por %p259, %p260
      %p262 = scmp.ne.s32.totalorder %s251, %s252
      %p263 = scmp.eq.s32.totalorder %s33, 0
      %p264 = por %p262, %p263
      %p265 = scmp.ne.s32.totalorder %s251, %s252
      %p266 = scmp.eq.s32.totalorder %s34, 3
      %p267 = por %p265, %p266
      %p269 = scmp.ne.s32.totalorder %s252, %s268
      %p270 = scmp.eq.s32.totalorder %s34, 0
      %p271 = por %p269, %p270
      %p272 = scmp.le.s32.totalorder 1, %s28
      %p273 = scmp.lt.s32.totalorder %s28, 5
      %p274 = pnand %p272, %p273
      %p275 = pneg %p274
      // Predicated region
      $region9: #{tpu_custom_call.1} parent=5 // pred_check
        _
      $region10: #{tpu_custom_call.1} parent=5 // pred_check_branch
        %277 = sbr.rel (%p274) target = $region12
      $region11: #{tpu_custom_call.1} parent=5 // pred_region
        %s278 = ssub.s32 %s28, 1
        // Predicated region
        $region13: #{tpu_custom_call.1} parent=11 // pred_check
          %p279 = pneg %p173
        $region14: #{tpu_custom_call.1} parent=11 // pred_check_branch
          %281 = sbr.rel (%p279) target = $region16
        $region15: #{tpu_custom_call.1} parent=11 // pred_region
          %s283 = ssub.s32 384, 384
          %284 = vsyncadd [#allocation9], %s283
          %s285 = sshll.u32 [#allocation10], 4
          %s286 = int_to_ptr.vmem [resolvable:$true] %s285
          %291 = dma.hbm_to_vmem [thread:$0]  %s4, 384, %s286, [#allocation9], 128, 128, 8
        $region16: #{tpu_custom_call.1} parent=11 // pred_fallthru
          _
        // Predicated region
        $region17: #{tpu_custom_call.1} parent=11 // pred_check
          %p292 = pneg %p194
        $region18: #{tpu_custom_call.1} parent=11 // pred_check_branch
          %294 = sbr.rel (%p292) target = $region20
        $region19: #{tpu_custom_call.1} parent=11 // pred_region
          %s296 = ssub.s32 16, 16
          %297 = vsyncadd [#allocation12], %s296
          %s299 = sshll.u32 [#allocation11], 4
          %s300 = int_to_ptr.vmem [resolvable:$true] %s299
          %302 = dma.hbm_to_vmem [thread:$0]  %s5, 16, %s300, [#allocation12]
        $region20: #{tpu_custom_call.1} parent=11 // pred_fallthru
          _
        // Predicated region
        $region21: #{tpu_custom_call.1} parent=11 // pred_check
          %p303 = pneg %p215
        $region22: #{tpu_custom_call.1} parent=11 // pred_check_branch
          %305 = sbr.rel (%p303) target = $region24
        $region23: #{tpu_custom_call.1} parent=11 // pred_region
          %s307 = ssub.s32 768, 768
          %308 = vsyncadd [#allocation12], %s307
          %s309 = sshll.u32 [#allocation13], 4
          %s310 = int_to_ptr.vmem [resolvable:$true] %s309
          %315 = dma.hbm_to_vmem [thread:$0]  %s6, 768, %s310, [#allocation12], 128, 128, 8
        $region24: #{tpu_custom_call.1} parent=11 // pred_fallthru
          _
        // Predicated region
        $region25: #{tpu_custom_call.1} parent=11 // pred_check
          %p316 = pneg %p236
        $region26: #{tpu_custom_call.1} parent=11 // pred_check_branch
          %318 = sbr.rel (%p316) target = $region28
        $region27: #{tpu_custom_call.1} parent=11 // pred_region
          %s320 = ssub.s32 16, 16
          %321 = vsyncadd [#allocation15], %s320
          %s323 = sshll.u32 [#allocation14], 4
          %s324 = int_to_ptr.vmem [resolvable:$true] %s323
          %326 = dma.hbm_to_vmem [thread:$0]  %s7, 16, %s324, [#allocation15]
        $region28: #{tpu_custom_call.1} parent=11 // pred_fallthru
          _
      $region12: #{tpu_custom_call.1} parent=5 // pred_fallthru
        _
      %p327 = scmp.lt.s32.totalorder %s28, 4
      // Predicated region
      $region29: #{tpu_custom_call.1} parent=5 // pred_check
        %p328 = pneg %p327
      $region30: #{tpu_custom_call.1} parent=5 // pred_check_branch
        %330 = sbr.rel (%p328) target = $region32
      $region31: #{tpu_custom_call.1} parent=5 // pred_region
        // Predicated region
        $region33: #{tpu_custom_call.1} parent=31 // pred_check
          %p331 = pneg %p62
        $region34: #{tpu_custom_call.1} parent=31 // pred_check_branch
          %333 = sbr.rel (%p331) target = $region36
        $region35: #{tpu_custom_call.1} parent=31 // pred_region
          %s334 = sand.u32 %s52, 1
          %s335 = scalar_lea.sflag [#allocation3], %s334
          %s336 = sand.u32 %s52, 1
          %s337 = smul.addr %s336, 16
          %s338 = scalar_lea.vmem [#allocation2], %s337
          %s339 = smul.u32 2, %s36
          %s341 = ssub.s32 256, 256
          %342 = vsyncadd %s335, %s341
          %s343 = smul.addr %s35, 4
          %s344 = sadd.s32 %s339, %s343
          %s345 = smul.addr %s344, 128
          %s346 = scalar_lea.hbm %s0, %s345
          %s347 = sshll.u32 %s338, 4
          %s348 = int_to_ptr.vmem [resolvable:$true] %s347
          %353 = dma.hbm_to_vmem [thread:$0]  %s346, 256, %s348, %s335, 128, 128, 8
        $region36: #{tpu_custom_call.1} parent=31 // pred_fallthru
          _
        // Predicated region
        $region37: #{tpu_custom_call.1} parent=31 // pred_check
          %p354 = pneg %p90
        $region38: #{tpu_custom_call.1} parent=31 // pred_check_branch
          %356 = sbr.rel (%p354) target = $region40
        $region39: #{tpu_custom_call.1} parent=31 // pred_region
          %s357 = sand.u32 %s28, 1
          %s358 = scalar_lea.sflag [#allocation6], %s357
          %s359 = sand.u32 %s80, 1
          %s360 = smul.addr %s359, 6
          %s361 = scalar_lea.vmem [#allocation5], %s360
          %s363 = ssub.s32 96, 96
          %364 = vsyncadd %s358, %s363
          %s365 = smul.addr %s36, 3
          %s366 = smul.addr %s35, 6
          %s367 = sadd.s32 %s365, %s366
          %s368 = smul.addr %s367, 32
          %s369 = scalar_lea.hbm %s1, %s368
          %s370 = sshll.u32 %s361, 4
          %s371 = int_to_ptr.vmem [resolvable:$true] %s370
          %376 = dma.hbm_to_vmem [thread:$0]  %s369, 96, %s371, %s358, 32, 32, 2
        $region40: #{tpu_custom_call.1} parent=31 // pred_fallthru
          _
        // Predicated region
        $region41: #{tpu_custom_call.1} parent=31 // pred_check
          %p377 = pneg %p118
        $region42: #{tpu_custom_call.1} parent=31 // pred_check_branch
          %379 = sbr.rel (%p377) target = $region44
        $region43: #{tpu_custom_call.1} parent=31 // pred_region
          %s380 = sand.u32 %s28, 1
          %s381 = scalar_lea.sflag [#allocation6], %s380
          %s382 = sand.u32 %s108, 1
          %s383 = smul.addr %s382, 16
          %s384 = scalar_lea.vmem [#allocation7], %s383
          %s385 = smul.u32 2, %s36
          %s387 = ssub.s32 256, 256
          %388 = vsyncadd %s381, %s387
          %s389 = smul.addr %s35, 4
          %s390 = sadd.s32 %s385, %s389
          %s391 = smul.addr %s390, 128
          %s392 = scalar_lea.hbm %s2, %s391
          %s393 = sshll.u32 %s384, 4
          %s394 = int_to_ptr.vmem [resolvable:$true] %s393
          %399 = dma.hbm_to_vmem [thread:$0]  %s392, 256, %s394, %s381, 128, 128, 8
        $region44: #{tpu_custom_call.1} parent=31 // pred_fallthru
          _
        // Predicated region
        $region45: #{tpu_custom_call.1} parent=31 // pred_check
          %p400 = pneg %p146
        $region46: #{tpu_custom_call.1} parent=31 // pred_check_branch
          %402 = sbr.rel (%p400) target = $region48
        $region47: #{tpu_custom_call.1} parent=31 // pred_region
          %s403 = sand.u32 %s28, 1
          %s404 = scalar_lea.sflag [#allocation9], %s403
          %s405 = sand.u32 %s136, 1
          %s406 = smul.addr %s405, 2
          %s407 = scalar_lea.vmem [#allocation8], %s406
          %s409 = ssub.s32 32, 32
          %410 = vsyncadd %s404, %s409
          %s411 = smul.addr %s35, 2
          %s412 = sadd.s32 %s36, %s411
          %s413 = smul.addr %s412, 32
          %s414 = scalar_lea.hbm %s3, %s413
          %s416 = sshll.u32 %s407, 4
          %s417 = int_to_ptr.vmem [resolvable:$true] %s416
          %419 = dma.hbm_to_vmem [thread:$0]  %s414, 32, %s417, %s404
        $region48: #{tpu_custom_call.1} parent=31 // pred_fallthru
          _
      $region32: #{tpu_custom_call.1} parent=5 // pred_fallthru
        _
      %p420 = scmp.le.s32.totalorder 1, %s28
      %p421 = scmp.lt.s32.totalorder %s28, 5
      %p422 = pnand %p420, %p421
      %p423 = pneg %p422
      // Predicated region
      $region49: #{tpu_custom_call.1} parent=5 // pred_check
        _
      $region50: #{tpu_custom_call.1} parent=5 // pred_check_branch
        %425 = sbr.rel (%p422) target = $region52
      $region51: #{tpu_custom_call.1} parent=5 // pred_region
        %s426 = ssub.s32 %s28, 1
        %s427 = sand.u32 %s55, 1
        %s428 = scalar_lea.sflag [#allocation3], %s427
        %s429 = sand.u32 %s55, 1
        %s430 = smul.addr %s429, 16
        %s431 = scalar_lea.vmem [#allocation2], %s430
        // Predicated region
        $region53: #{tpu_custom_call.1} parent=51 // pred_check
          %p432 = pneg %p68
        $region54: #{tpu_custom_call.1} parent=51 // pred_check_branch
          %434 = sbr.rel (%p432) target = $region56
        $region55: #{tpu_custom_call.1} parent=51 // pred_region
          %435 = dma.done %s428, 256
        $region56: #{tpu_custom_call.1} parent=51 // pred_fallthru
          _
        %s436 = sand.u32 %s33, 1
        %s437 = scalar_lea.sflag [#allocation6], %s436
        %s438 = sand.u32 %s83, 1
        %s439 = smul.addr %s438, 6
        %s440 = scalar_lea.vmem [#allocation5], %s439
        // Predicated region
        $region57: #{tpu_custom_call.1} parent=51 // pred_check
          %p441 = pneg %p96
        $region58: #{tpu_custom_call.1} parent=51 // pred_check_branch
          %443 = sbr.rel (%p441) target = $region60
        $region59: #{tpu_custom_call.1} parent=51 // pred_region
          %444 = dma.done %s437, 96
        $region60: #{tpu_custom_call.1} parent=51 // pred_fallthru
          _
        %s445 = sand.u32 %s33, 1
        %s446 = scalar_lea.sflag [#allocation6], %s445
        %s447 = sand.u32 %s111, 1
        %s448 = smul.addr %s447, 16
        %s449 = scalar_lea.vmem [#allocation7], %s448
        // Predicated region
        $region61: #{tpu_custom_call.1} parent=51 // pred_check
          %p450 = pneg %p124
        $region62: #{tpu_custom_call.1} parent=51 // pred_check_branch
          %452 = sbr.rel (%p450) target = $region64
        $region63: #{tpu_custom_call.1} parent=51 // pred_region
          %453 = dma.done %s446, 256
        $region64: #{tpu_custom_call.1} parent=51 // pred_fallthru
          _
        %s454 = sand.u32 %s33, 1
        %s455 = scalar_lea.sflag [#allocation9], %s454
        %s456 = sand.u32 %s139, 1
        %s457 = smul.addr %s456, 2
        %s458 = scalar_lea.vmem [#allocation8], %s457
        // Predicated region
        $region65: #{tpu_custom_call.1} parent=51 // pred_check
          %p459 = pneg %p152
        $region66: #{tpu_custom_call.1} parent=51 // pred_check_branch
          %461 = sbr.rel (%p459) target = $region68
        $region67: #{tpu_custom_call.1} parent=51 // pred_region
          %462 = dma.done %s455, 32
        $region68: #{tpu_custom_call.1} parent=51 // pred_fallthru
          _
        // Predicated region
        $region69: #{tpu_custom_call.1} parent=51 // pred_check
          %p463 = pneg %p173
        $region70: #{tpu_custom_call.1} parent=51 // pred_check_branch
          %465 = sbr.rel (%p463) target = $region72
        $region71: #{tpu_custom_call.1} parent=51 // pred_region
          %466 = dma.done [#allocation9], 384
        $region72: #{tpu_custom_call.1} parent=51 // pred_fallthru
          _
        // Predicated region
        $region73: #{tpu_custom_call.1} parent=51 // pred_check
          %p467 = pneg %p194
        $region74: #{tpu_custom_call.1} parent=51 // pred_check_branch
          %469 = sbr.rel (%p467) target = $region76
        $region75: #{tpu_custom_call.1} parent=51 // pred_region
          %470 = dma.done [#allocation12], 16
        $region76: #{tpu_custom_call.1} parent=51 // pred_fallthru
          _
        // Predicated region
        $region77: #{tpu_custom_call.1} parent=51 // pred_check
          %p471 = pneg %p215
        $region78: #{tpu_custom_call.1} parent=51 // pred_check_branch
          %473 = sbr.rel (%p471) target = $region80
        $region79: #{tpu_custom_call.1} parent=51 // pred_region
          %474 = dma.done [#allocation12], 768
        $region80: #{tpu_custom_call.1} parent=51 // pred_fallthru
          _
        // Predicated region
        $region81: #{tpu_custom_call.1} parent=51 // pred_check
          %p475 = pneg %p236
        $region82: #{tpu_custom_call.1} parent=51 // pred_check_branch
          %477 = sbr.rel (%p475) target = $region84
        $region83: #{tpu_custom_call.1} parent=51 // pred_region
          %478 = dma.done [#allocation15], 16
        $region84: #{tpu_custom_call.1} parent=51 // pred_fallthru
          _
        %s479 = sand.u32 %s55, 1
        %s480 = scalar_lea.sflag [#allocation3], %s479
        %s481 = sand.u32 %s55, 1
        %s482 = smul.addr %s481, 16
        %s483 = scalar_lea.vmem [#allocation2], %s482
        %p484 = pneg %p68
        %p485 = pneg %p65
        %s486 = sand.u32 %s33, 1
        %s487 = scalar_lea.sflag [#allocation6], %s486
        %s488 = sand.u32 %s83, 1
        %s489 = smul.addr %s488, 6
        %s490 = scalar_lea.vmem [#allocation5], %s489
        %p491 = pneg %p96
        %p492 = pneg %p93
        %s493 = sand.u32 %s33, 1
        %s494 = scalar_lea.sflag [#allocation6], %s493
        %s495 = sand.u32 %s111, 1
        %s496 = smul.addr %s495, 16
        %s497 = scalar_lea.vmem [#allocation7], %s496
        %p498 = pneg %p124
        %p499 = pneg %p121
        %s500 = sand.u32 %s33, 1
        %s501 = scalar_lea.sflag [#allocation9], %s500
        %s502 = sand.u32 %s139, 1
        %s503 = smul.addr %s502, 2
        %s504 = scalar_lea.vmem [#allocation8], %s503
        %p505 = pneg %p152
        %p506 = pneg %p149
        %p507 = pneg %p173
        %p508 = pneg %p170
        %p509 = pneg %p194
        %p510 = pneg %p191
        %p511 = pneg %p215
        %p512 = pneg %p212
        %p513 = pneg %p236
        %p514 = pneg %p233
        %p515 = pneg %p264
        %p516 = pneg %p261
        %s517 = sand.u32 %s251, 1
        %s518 = scalar_lea.sflag [#allocation4], %s517
        %s519 = sand.u32 %s251, 1
        %s520 = smul.addr %s519, 16
        %s521 = scalar_lea.vmem [#allocation16], %s520
        %s522 = smul.u32 2, %s38
        %s523 = smul.u32 2, %s38
        %s524 = smul.u32 2, %s38
        %v525 = vld [vmem:[%s431] sm:$0xff]
        %v526 = vld [vmem:[%s431 + $0x8] sm:$0xff]
        %v527 = vld [vmem:[%s449] sm:$0xff]
        %v528 = vld [vmem:[%s449 + $0x8] sm:$0xff]
        %v529 = vld [vmem:[%s440] sm:$0x3]
        %v530 = vld [vmem:[%s440 + $0x2] sm:$0x3]
        %v531 = vld [vmem:[%s440 + $0x4] sm:$0x3]
        %v532 = vld [vmem:[%s458] sm:$0x3]
        %v533 = vlaneseq
        %v534 = vshrl.u32 %v533, 7
        %v535 = vadd.s32 %v534, 8
        %vm536 = vcmp.eq.s32.totalorder %v534, 0
        %vm537 = vcmp.eq.s32.totalorder %v535, 0
        %vm538 = vcmp.eq.s32.totalorder %v534, 15
        %vm539 = vcmp.eq.s32.totalorder %v535, 15
        %v540 = vrot.slane %v525, 7
        %v541 = vrot.slane %v526, 7
        %vm542 = vcmp.lt.s32.totalorder %v534, 1
        %v543 = vsel %vm542, %v540, %v541
        %v544 = vsel %vm542, %v541, %v540
        %v545 = vsel %vm536, 1, 0
        %v546 = vsel %vm537, 1, 0
        %vm547 = vcmp.eq.s32.totalorder %v545, 1
        %vm548 = vcmp.eq.s32.totalorder %v546, 1
        %v549 = vlaneseq
        %v550 = vshrl.u32 %v549, 7
        %v551 = vsub.s32 0, %v550
        %v552 = vrot.slane %v530, %v551
        %v553 = vsel %vm547, %v552, %v544
        %v554 = vsel %vm548, %v552, %v543
        %v555 = vrot.slane %v525, 1
        %v556 = vrot.slane %v526, 1
        %vm557 = vcmp.lt.s32.totalorder %v534, 7
        %v558 = vsel %vm557, %v555, %v556
        %v559 = vsel %vm557, %v556, %v555
        %v560 = vsel %vm538, 1, 0
        %v561 = vsel %vm539, 1, 0
        %vm562 = vcmp.eq.s32.totalorder %v560, 1
        %vm563 = vcmp.eq.s32.totalorder %v561, 1
        %v564 = vlaneseq
        %v565 = vshrl.u32 %v564, 7
        %v566 = vsub.s32 1, %v565
        %v567 = vrot.slane %v530, %v566
        %v568 = vsel %vm562, %v567, %v558
        %v569 = vsel %vm563, %v567, %v559
        %v570 = vld [vmem:[#allocation10] sm:$0xff]
        %s571 = scalar_lea.vmem [#allocation10], 8
        %v572 = vld [vmem:[%s571] sm:$0xff]
        %vm573 = vcmask 64512
        %v575 = vsel %vm573, %v525, 0
        %v578 = vsel %vm573, %v526, 0
        %580 = vmatprep.subr.mxu0 0.0
        %581 = vmatpush1.msra.mxu0 %v572
        %582 = vmatprep.subr.mxu0 0.0
        %583 = vmatpush1.msra.mxu0 0.0
        %584 = vmatprep.subr.mxu0 0.0
        %585 = vmatpush1.msra.mxu0 0.0
        %586 = vmatprep.subr.mxu0 0.0
        %587 = vmatpush1.msra.mxu0 0.0
        %588 = vmatprep.subr.mxu0 0.0
        %589 = vmatpush1.msra.mxu0 0.0
        %590 = vmatprep.subr.mxu0 0.0
        %591 = vmatpush1.msra.mxu0 0.0
        %592 = vmatprep.subr.mxu0 0.0
        %593 = vmatpush1.msra.mxu0 0.0
        %594 = vmatprep.subr.mxu0 0.0
        %595 = vmatpush1.msra.mxu0 0.0
        %596 = vmatprep.subr.mxu0 0.0
        %597 = vmatpush1.msra.mxu0 0.0
        %598 = vmatprep.subr.mxu0 0.0
        %599 = vmatpush1.msra.mxu0 0.0
        %600 = vmatprep.subr.mxu0 0.0
        %601 = vmatpush1.msra.mxu0 0.0
        %602 = vmatprep.subr.mxu0 0.0
        %603 = vmatpush1.msra.mxu0 0.0
        %604 = vmatprep.subr.mxu0 0.0
        %605 = vmatpush1.msra.mxu0 0.0
        %606 = vmatprep.subr.mxu0 0.0
        %607 = vmatpush1.msra.mxu0 0.0
        %608 = vmatprep.subr.mxu0 0.0
        %609 = vmatpush1.msra.mxu0 0.0
        %610 = vmatprep.subr.mxu0 0.0
        %611 = vmatpush1.msra.mxu0 0.0
        %612 = vmatprep.subr.mxu0 0.0
        %613 = vmatpush1.msra.mxu0 0.0
        %614 = vmatprep.subr.mxu0 0.0
        %615 = vmatpush1.msra.mxu0 0.0
        %616 = vmatprep.subr.mxu0 0.0
        %617 = vmatpush1.msra.mxu0 0.0
        %618 = vmatprep.subr.mxu0 0.0
        %619 = vmatpush1.msra.mxu0 0.0
        %620 = vmatprep.subr.mxu0 0.0
        %621 = vmatpush1.msra.mxu0 0.0
        %622 = vmatprep.subr.mxu0 0.0
        %623 = vmatpush1.msra.mxu0 0.0
        %624 = vmatprep.subr.mxu0 0.0
        %625 = vmatpush1.msra.mxu0 0.0
        %626 = vmatprep.subr.mxu0 0.0
        %627 = vmatpush1.msra.mxu0 0.0
        %628 = vmatprep.subr.mxu0 0.0
        %629 = vmatpush1.msra.mxu0 0.0
        %630 = vmatprep.subr.mxu0 0.0
        %631 = vmatpush1.msra.mxu0 0.0
        %632 = vmatprep.subr.mxu0 0.0
        %633 = vmatpush1.msra.mxu0 0.0
        %634 = vmatprep.subr.mxu0 0.0
        %635 = vmatpush1.msra.mxu0 0.0
        %636 = vmatprep.subr.mxu0 0.0
        %637 = vmatpush1.msra.mxu0 0.0
        %638 = vmatprep.subr.mxu0 0.0
        %639 = vmatpush1.msra.mxu0 0.0
        %640 = vmatprep.subr.mxu0 0.0
        %641 = vmatpush1.msra.mxu0 0.0
        %642 = vmatprep.subr.mxu0 0.0
        %643 = vmatpush1.msra.mxu0 0.0
        %644 = vmatprep.mubr.f32.mxu0 0.0
        %645 = vmatmul.mubr.f32.gmra.mrb[0].mxu0 %v575
        %v646 = vpop.f32.mrb[0].mxu0
        %v647 = vadd.f32 0.0, %v646
        %v648 = vpop.f32.mrb[0].mxu0
        %649 = vmatprep.mubr.f32.mxu0 0.0
        %650 = vmatmul.mubr.f32.gmra.mrb[0].mxu0 %v578
        %v651 = vpop.f32.mrb[0].mxu0
        %v652 = vadd.f32 0.0, %v651
        %v653 = vpop.f32.mrb[0].mxu0
        %654 = vdwg.mxu0
        %v656 = vsel %vm573, %v553, 0
        %v659 = vsel %vm573, %v554, 0
        %661 = vmatprep.subr.mxu0 0.0
        %662 = vmatpush1.msra.mxu0 %v570
        %663 = vmatprep.subr.mxu0 0.0
        %664 = vmatpush1.msra.mxu0 0.0
        %665 = vmatprep.subr.mxu0 0.0
        %666 = vmatpush1.msra.mxu0 0.0
        %667 = vmatprep.subr.mxu0 0.0
        %668 = vmatpush1.msra.mxu0 0.0
        %669 = vmatprep.subr.mxu0 0.0
        %670 = vmatpush1.msra.mxu0 0.0
        %671 = vmatprep.subr.mxu0 0.0
        %672 = vmatpush1.msra.mxu0 0.0
        %673 = vmatprep.subr.mxu0 0.0
        %674 = vmatpush1.msra.mxu0 0.0
        %675 = vmatprep.subr.mxu0 0.0
        %676 = vmatpush1.msra.mxu0 0.0
        %677 = vmatprep.subr.mxu0 0.0
        %678 = vmatpush1.msra.mxu0 0.0
        %679 = vmatprep.subr.mxu0 0.0
        %680 = vmatpush1.msra.mxu0 0.0
        %681 = vmatprep.subr.mxu0 0.0
        %682 = vmatpush1.msra.mxu0 0.0
        %683 = vmatprep.subr.mxu0 0.0
        %684 = vmatpush1.msra.mxu0 0.0
        %685 = vmatprep.subr.mxu0 0.0
        %686 = vmatpush1.msra.mxu0 0.0
        %687 = vmatprep.subr.mxu0 0.0
        %688 = vmatpush1.msra.mxu0 0.0
        %689 = vmatprep.subr.mxu0 0.0
        %690 = vmatpush1.msra.mxu0 0.0
        %691 = vmatprep.subr.mxu0 0.0
        %692 = vmatpush1.msra.mxu0 0.0
        %693 = vmatprep.subr.mxu0 0.0
        %694 = vmatpush1.msra.mxu0 0.0
        %695 = vmatprep.subr.mxu0 0.0
        %696 = vmatpush1.msra.mxu0 0.0
        %697 = vmatprep.subr.mxu0 0.0
        %698 = vmatpush1.msra.mxu0 0.0
        %699 = vmatprep.subr.mxu0 0.0
        %700 = vmatpush1.msra.mxu0 0.0
        %701 = vmatprep.subr.mxu0 0.0
        %702 = vmatpush1.msra.mxu0 0.0
        %703 = vmatprep.subr.mxu0 0.0
        %704 = vmatpush1.msra.mxu0 0.0
        %705 = vmatprep.subr.mxu0 0.0
        %706 = vmatpush1.msra.mxu0 0.0
        %707 = vmatprep.subr.mxu0 0.0
        %708 = vmatpush1.msra.mxu0 0.0
        %709 = vmatprep.subr.mxu0 0.0
        %710 = vmatpush1.msra.mxu0 0.0
        %711 = vmatprep.subr.mxu0 0.0
        %712 = vmatpush1.msra.mxu0 0.0
        %713 = vmatprep.subr.mxu0 0.0
        %714 = vmatpush1.msra.mxu0 0.0
        %715 = vmatprep.subr.mxu0 0.0
        %716 = vmatpush1.msra.mxu0 0.0
        %717 = vmatprep.subr.mxu0 0.0
        %718 = vmatpush1.msra.mxu0 0.0
        %719 = vmatprep.subr.mxu0 0.0
        %720 = vmatpush1.msra.mxu0 0.0
        %721 = vmatprep.subr.mxu0 0.0
        %722 = vmatpush1.msra.mxu0 0.0
        %723 = vmatprep.subr.mxu0 0.0
        %724 = vmatpush1.msra.mxu0 0.0
        %725 = vmatprep.mubr.f32.mxu0 0.0
        %726 = vmatmul.mubr.f32.gmra.mrb[0].mxu0 %v656
        %v727 = vpop.f32.mrb[0].mxu0
        %v728 = vadd.f32 %v647, %v727
        %v729 = vpop.f32.mrb[0].mxu0
        %730 = vmatprep.mubr.f32.mxu0 0.0
        %731 = vmatmul.mubr.f32.gmra.mrb[0].mxu0 %v659
        %v732 = vpop.f32.mrb[0].mxu0
        %v733 = vadd.f32 %v652, %v732
        %v734 = vpop.f32.mrb[0].mxu0
        %735 = vdwg.mxu0
        %s736 = scalar_lea.vmem [#allocation10], 16
        %v737 = vld [vmem:[%s736] sm:$0xff]
        %v739 = vsel %vm573, %v568, 0
        %v742 = vsel %vm573, %v569, 0
        %744 = vmatprep.subr.mxu0 0.0
        %745 = vmatpush1.msra.mxu0 %v737
        %746 = vmatprep.subr.mxu0 0.0
        %747 = vmatpush1.msra.mxu0 0.0
        %748 = vmatprep.subr.mxu0 0.0
        %749 = vmatpush1.msra.mxu0 0.0
        %750 = vmatprep.subr.mxu0 0.0
        %751 = vmatpush1.msra.mxu0 0.0
        %752 = vmatprep.subr.mxu0 0.0
        %753 = vmatpush1.msra.mxu0 0.0
        %754 = vmatprep.subr.mxu0 0.0
        %755 = vmatpush1.msra.mxu0 0.0
        %756 = vmatprep.subr.mxu0 0.0
        %757 = vmatpush1.msra.mxu0 0.0
        %758 = vmatprep.subr.mxu0 0.0
        %759 = vmatpush1.msra.mxu0 0.0
        %760 = vmatprep.subr.mxu0 0.0
        %761 = vmatpush1.msra.mxu0 0.0
        %762 = vmatprep.subr.mxu0 0.0
        %763 = vmatpush1.msra.mxu0 0.0
        %764 = vmatprep.subr.mxu0 0.0
        %765 = vmatpush1.msra.mxu0 0.0
        %766 = vmatprep.subr.mxu0 0.0
        %767 = vmatpush1.msra.mxu0 0.0
        %768 = vmatprep.subr.mxu0 0.0
        %769 = vmatpush1.msra.mxu0 0.0
        %770 = vmatprep.subr.mxu0 0.0
        %771 = vmatpush1.msra.mxu0 0.0
        %772 = vmatprep.subr.mxu0 0.0
        %773 = vmatpush1.msra.mxu0 0.0
        %774 = vmatprep.subr.mxu0 0.0
        %775 = vmatpush1.msra.mxu0 0.0
        %776 = vmatprep.subr.mxu0 0.0
        %777 = vmatpush1.msra.mxu0 0.0
        %778 = vmatprep.subr.mxu0 0.0
        %779 = vmatpush1.msra.mxu0 0.0
        %780 = vmatprep.subr.mxu0 0.0
        %781 = vmatpush1.msra.mxu0 0.0
        %782 = vmatprep.subr.mxu0 0.0
        %783 = vmatpush1.msra.mxu0 0.0
        %784 = vmatprep.subr.mxu0 0.0
        %785 = vmatpush1.msra.mxu0 0.0
        %786 = vmatprep.subr.mxu0 0.0
        %787 = vmatpush1.msra.mxu0 0.0
        %788 = vmatprep.subr.mxu0 0.0
        %789 = vmatpush1.msra.mxu0 0.0
        %790 = vmatprep.subr.mxu0 0.0
        %791 = vmatpush1.msra.mxu0 0.0
        %792 = vmatprep.subr.mxu0 0.0
        %793 = vmatpush1.msra.mxu0 0.0
        %794 = vmatprep.subr.mxu0 0.0
        %795 = vmatpush1.msra.mxu0 0.0
        %796 = vmatprep.subr.mxu0 0.0
        %797 = vmatpush1.msra.mxu0 0.0
        %798 = vmatprep.subr.mxu0 0.0
        %799 = vmatpush1.msra.mxu0 0.0
        %800 = vmatprep.subr.mxu0 0.0
        %801 = vmatpush1.msra.mxu0 0.0
        %802 = vmatprep.subr.mxu0 0.0
        %803 = vmatpush1.msra.mxu0 0.0
        %804 = vmatprep.subr.mxu0 0.0
        %805 = vmatpush1.msra.mxu0 0.0
        %806 = vmatprep.subr.mxu0 0.0
        %807 = vmatpush1.msra.mxu0 0.0
        %808 = vmatprep.mubr.f32.mxu0 0.0
        %809 = vmatmul.mubr.f32.gmra.mrb[0].mxu0 %v739
        %v810 = vpop.f32.mrb[0].mxu0
        %v811 = vadd.f32 0.0, %v810
        %v812 = vpop.f32.mrb[0].mxu0
        %813 = vmatprep.mubr.f32.mxu0 0.0
        %814 = vmatmul.mubr.f32.gmra.mrb[0].mxu0 %v742
        %v815 = vpop.f32.mrb[0].mxu0
        %v816 = vadd.f32 0.0, %v815
        %v817 = vpop.f32.mrb[0].mxu0
        %818 = vdwg.mxu0
        %v819 = vadd.f32 %v728, %v811
        %v820 = vadd.f32 %v733, %v816
        %v821 = vld [vmem:[#allocation11] sm:$0x1]
        %v823 = vlaneseq
        %v824 = vshrl.u32 %v823, 7
        %v825 = vsub.s32 0, %v824
        %v826 = vrot.slane %v821, %v825
        %v828 = vadd.f32 %v819, %v826
        %v829 = vadd.f32 %v820, %v826
        %831 = vset.pattern.permute.xlu0 0
        %832 = vperm.xlu0 %831, %v527
        %v833 = vpop.permute.xlu0 %832
        %836 = vset.pattern.permute.xlu0 0
        %837 = vperm.xlu0 %836, %v528
        %v838 = vpop.permute.xlu0 %837
        %v840 = vmul.f32 %v828, %v833
        %v841 = vmul.f32 %v829, %v838
        %v842 = vmax.f32 %v840, 0.0
        %v843 = vmax.f32 %v841, 0.0
        %v845 = vsel %vm573, %v530, 0
        %847 = vmatprep.subr.mxu0 0.0
        %848 = vmatpush1.msra.mxu0 %v572
        %849 = vmatprep.subr.mxu0 0.0
        %850 = vmatpush1.msra.mxu0 0.0
        %851 = vmatprep.subr.mxu0 0.0
        %852 = vmatpush1.msra.mxu0 0.0
        %853 = vmatprep.subr.mxu0 0.0
        %854 = vmatpush1.msra.mxu0 0.0
        %855 = vmatprep.subr.mxu0 0.0
        %856 = vmatpush1.msra.mxu0 0.0
        %857 = vmatprep.subr.mxu0 0.0
        %858 = vmatpush1.msra.mxu0 0.0
        %859 = vmatprep.subr.mxu0 0.0
        %860 = vmatpush1.msra.mxu0 0.0
        %861 = vmatprep.subr.mxu0 0.0
        %862 = vmatpush1.msra.mxu0 0.0
        %863 = vmatprep.subr.mxu0 0.0
        %864 = vmatpush1.msra.mxu0 0.0
        %865 = vmatprep.subr.mxu0 0.0
        %866 = vmatpush1.msra.mxu0 0.0
        %867 = vmatprep.subr.mxu0 0.0
        %868 = vmatpush1.msra.mxu0 0.0
        %869 = vmatprep.subr.mxu0 0.0
        %870 = vmatpush1.msra.mxu0 0.0
        %871 = vmatprep.subr.mxu0 0.0
        %872 = vmatpush1.msra.mxu0 0.0
        %873 = vmatprep.subr.mxu0 0.0
        %874 = vmatpush1.msra.mxu0 0.0
        %875 = vmatprep.subr.mxu0 0.0
        %876 = vmatpush1.msra.mxu0 0.0
        %877 = vmatprep.subr.mxu0 0.0
        %878 = vmatpush1.msra.mxu0 0.0
        %879 = vmatprep.subr.mxu0 0.0
        %880 = vmatpush1.msra.mxu0 0.0
        %881 = vmatprep.subr.mxu0 0.0
        %882 = vmatpush1.msra.mxu0 0.0
        %883 = vmatprep.subr.mxu0 0.0
        %884 = vmatpush1.msra.mxu0 0.0
        %885 = vmatprep.subr.mxu0 0.0
        %886 = vmatpush1.msra.mxu0 0.0
        %887 = vmatprep.subr.mxu0 0.0
        %888 = vmatpush1.msra.mxu0 0.0
        %889 = vmatprep.subr.mxu0 0.0
        %890 = vmatpush1.msra.mxu0 0.0
        %891 = vmatprep.subr.mxu0 0.0
        %892 = vmatpush1.msra.mxu0 0.0
        %893 = vmatprep.subr.mxu0 0.0
        %894 = vmatpush1.msra.mxu0 0.0
        %895 = vmatprep.subr.mxu0 0.0
        %896 = vmatpush1.msra.mxu0 0.0
        %897 = vmatprep.subr.mxu0 0.0
        %898 = vmatpush1.msra.mxu0 0.0
        %899 = vmatprep.subr.mxu0 0.0
        %900 = vmatpush1.msra.mxu0 0.0
        %901 = vmatprep.subr.mxu0 0.0
        %902 = vmatpush1.msra.mxu0 0.0
        %903 = vmatprep.subr.mxu0 0.0
        %904 = vmatpush1.msra.mxu0 0.0
        %905 = vmatprep.subr.mxu0 0.0
        %906 = vmatpush1.msra.mxu0 0.0
        %907 = vmatprep.subr.mxu0 0.0
        %908 = vmatpush1.msra.mxu0 0.0
        %909 = vmatprep.subr.mxu0 0.0
        %910 = vmatpush1.msra.mxu0 0.0
        %911 = vmatprep.mubr.f32.mxu0 0.0
        %912 = vmatmul.mubr.f32.gmra.mrb[0].mxu0 %v845
        %v913 = vpop.f32.mrb[0].mxu0
        %v914 = vadd.f32 0.0, %v913
        %v915 = vpop.f32.mrb[0].mxu0
        %916 = vdwg.mxu0
        %v918 = vsel %vm573, %v529, 0
        %920 = vmatprep.subr.mxu0 0.0
        %921 = vmatpush1.msra.mxu0 %v570
        %922 = vmatprep.subr.mxu0 0.0
        %923 = vmatpush1.msra.mxu0 0.0
        %924 = vmatprep.subr.mxu0 0.0
        %925 = vmatpush1.msra.mxu0 0.0
        %926 = vmatprep.subr.mxu0 0.0
        %927 = vmatpush1.msra.mxu0 0.0
        %928 = vmatprep.subr.mxu0 0.0
        %929 = vmatpush1.msra.mxu0 0.0
        %930 = vmatprep.subr.mxu0 0.0
        %931 = vmatpush1.msra.mxu0 0.0
        %932 = vmatprep.subr.mxu0 0.0
        %933 = vmatpush1.msra.mxu0 0.0
        %934 = vmatprep.subr.mxu0 0.0
        %935 = vmatpush1.msra.mxu0 0.0
        %936 = vmatprep.subr.mxu0 0.0
        %937 = vmatpush1.msra.mxu0 0.0
        %938 = vmatprep.subr.mxu0 0.0
        %939 = vmatpush1.msra.mxu0 0.0
        %940 = vmatprep.subr.mxu0 0.0
        %941 = vmatpush1.msra.mxu0 0.0
        %942 = vmatprep.subr.mxu0 0.0
        %943 = vmatpush1.msra.mxu0 0.0
        %944 = vmatprep.subr.mxu0 0.0
        %945 = vmatpush1.msra.mxu0 0.0
        %946 = vmatprep.subr.mxu0 0.0
        %947 = vmatpush1.msra.mxu0 0.0
        %948 = vmatprep.subr.mxu0 0.0
        %949 = vmatpush1.msra.mxu0 0.0
        %950 = vmatprep.subr.mxu0 0.0
        %951 = vmatpush1.msra.mxu0 0.0
        %952 = vmatprep.subr.mxu0 0.0
        %953 = vmatpush1.msra.mxu0 0.0
        %954 = vmatprep.subr.mxu0 0.0
        %955 = vmatpush1.msra.mxu0 0.0
        %956 = vmatprep.subr.mxu0 0.0
        %957 = vmatpush1.msra.mxu0 0.0
        %958 = vmatprep.subr.mxu0 0.0
        %959 = vmatpush1.msra.mxu0 0.0
        %960 = vmatprep.subr.mxu0 0.0
        %961 = vmatpush1.msra.mxu0 0.0
        %962 = vmatprep.subr.mxu0 0.0
        %963 = vmatpush1.msra.mxu0 0.0
        %964 = vmatprep.subr.mxu0 0.0
        %965 = vmatpush1.msra.mxu0 0.0
        %966 = vmatprep.subr.mxu0 0.0
        %967 = vmatpush1.msra.mxu0 0.0
        %968 = vmatprep.subr.mxu0 0.0
        %969 = vmatpush1.msra.mxu0 0.0
        %970 = vmatprep.subr.mxu0 0.0
        %971 = vmatpush1.msra.mxu0 0.0
        %972 = vmatprep.subr.mxu0 0.0
        %973 = vmatpush1.msra.mxu0 0.0
        %974 = vmatprep.subr.mxu0 0.0
        %975 = vmatpush1.msra.mxu0 0.0
        %976 = vmatprep.subr.mxu0 0.0
        %977 = vmatpush1.msra.mxu0 0.0
        %978 = vmatprep.subr.mxu0 0.0
        %979 = vmatpush1.msra.mxu0 0.0
        %980 = vmatprep.subr.mxu0 0.0
        %981 = vmatpush1.msra.mxu0 0.0
        %982 = vmatprep.subr.mxu0 0.0
        %983 = vmatpush1.msra.mxu0 0.0
        %984 = vmatprep.mubr.f32.mxu0 0.0
        %985 = vmatmul.mubr.f32.gmra.mrb[0].mxu0 %v918
        %v986 = vpop.f32.mrb[0].mxu0
        %v987 = vadd.f32 %v914, %v986
        %v988 = vpop.f32.mrb[0].mxu0
        %989 = vdwg.mxu0
        %v991 = vsel %vm573, %v531, 0
        %993 = vmatprep.subr.mxu0 0.0
        %994 = vmatpush1.msra.mxu0 %v737
        %995 = vmatprep.subr.mxu0 0.0
        %996 = vmatpush1.msra.mxu0 0.0
        %997 = vmatprep.subr.mxu0 0.0
        %998 = vmatpush1.msra.mxu0 0.0
        %999 = vmatprep.subr.mxu0 0.0
        %1000 = vmatpush1.msra.mxu0 0.0
        %1001 = vmatprep.subr.mxu0 0.0
        %1002 = vmatpush1.msra.mxu0 0.0
        %1003 = vmatprep.subr.mxu0 0.0
        %1004 = vmatpush1.msra.mxu0 0.0
        %1005 = vmatprep.subr.mxu0 0.0
        %1006 = vmatpush1.msra.mxu0 0.0
        %1007 = vmatprep.subr.mxu0 0.0
        %1008 = vmatpush1.msra.mxu0 0.0
        %1009 = vmatprep.subr.mxu0 0.0
        %1010 = vmatpush1.msra.mxu0 0.0
        %1011 = vmatprep.subr.mxu0 0.0
        %1012 = vmatpush1.msra.mxu0 0.0
        %1013 = vmatprep.subr.mxu0 0.0
        %1014 = vmatpush1.msra.mxu0 0.0
        %1015 = vmatprep.subr.mxu0 0.0
        %1016 = vmatpush1.msra.mxu0 0.0
        %1017 = vmatprep.subr.mxu0 0.0
        %1018 = vmatpush1.msra.mxu0 0.0
        %1019 = vmatprep.subr.mxu0 0.0
        %1020 = vmatpush1.msra.mxu0 0.0
        %1021 = vmatprep.subr.mxu0 0.0
        %1022 = vmatpush1.msra.mxu0 0.0
        %1023 = vmatprep.subr.mxu0 0.0
        %1024 = vmatpush1.msra.mxu0 0.0
        %1025 = vmatprep.subr.mxu0 0.0
        %1026 = vmatpush1.msra.mxu0 0.0
        %1027 = vmatprep.subr.mxu0 0.0
        %1028 = vmatpush1.msra.mxu0 0.0
        %1029 = vmatprep.subr.mxu0 0.0
        %1030 = vmatpush1.msra.mxu0 0.0
        %1031 = vmatprep.subr.mxu0 0.0
        %1032 = vmatpush1.msra.mxu0 0.0
        %1033 = vmatprep.subr.mxu0 0.0
        %1034 = vmatpush1.msra.mxu0 0.0
        %1035 = vmatprep.subr.mxu0 0.0
        %1036 = vmatpush1.msra.mxu0 0.0
        %1037 = vmatprep.subr.mxu0 0.0
        %1038 = vmatpush1.msra.mxu0 0.0
        %1039 = vmatprep.subr.mxu0 0.0
        %1040 = vmatpush1.msra.mxu0 0.0
        %1041 = vmatprep.subr.mxu0 0.0
        %1042 = vmatpush1.msra.mxu0 0.0
        %1043 = vmatprep.subr.mxu0 0.0
        %1044 = vmatpush1.msra.mxu0 0.0
        %1045 = vmatprep.subr.mxu0 0.0
        %1046 = vmatpush1.msra.mxu0 0.0
        %1047 = vmatprep.subr.mxu0 0.0
        %1048 = vmatpush1.msra.mxu0 0.0
        %1049 = vmatprep.subr.mxu0 0.0
        %1050 = vmatpush1.msra.mxu0 0.0
        %1051 = vmatprep.subr.mxu0 0.0
        %1052 = vmatpush1.msra.mxu0 0.0
        %1053 = vmatprep.subr.mxu0 0.0
        %1054 = vmatpush1.msra.mxu0 0.0
        %1055 = vmatprep.subr.mxu0 0.0
        %1056 = vmatpush1.msra.mxu0 0.0
        %1057 = vmatprep.mubr.f32.mxu0 0.0
        %1058 = vmatmul.mubr.f32.gmra.mrb[0].mxu0 %v991
        %v1059 = vpop.f32.mrb[0].mxu0
        %v1060 = vadd.f32 0.0, %v1059
        %v1061 = vpop.f32.mrb[0].mxu0
        %1062 = vdwg.mxu0
        %v1063 = vadd.f32 %v987, %v1060
        %v1064 = vadd.f32 %v1063, %v826
        %1066 = vset.pattern.permute.xlu0 0
        %1067 = vperm.xlu0 %1066, %v532
        %v1068 = vpop.permute.xlu0 %1067
        %v1070 = vmul.f32 %v1064, %v1068
        %v1071 = vmax.f32 %v1070, 0.0
        %v1072 = vrot.slane %v842, 7
        %v1073 = vrot.slane %v843, 7
        %v1074 = vsel %vm542, %v1072, %v1073
        %v1075 = vsel %vm542, %v1073, %v1072
        %v1076 = vlaneseq
        %v1077 = vshrl.u32 %v1076, 7
        %v1078 = vsub.s32 0, %v1077
        %v1079 = vrot.slane %v1071, %v1078
        %v1080 = vsel %vm547, %v1079, %v1075
        %v1081 = vsel %vm548, %v1079, %v1074
        %v1082 = vrot.slane %v842, 1
        %v1083 = vrot.slane %v843, 1
        %v1084 = vsel %vm557, %v1082, %v1083
        %v1085 = vsel %vm557, %v1083, %v1082
        %v1086 = vlaneseq
        %v1087 = vshrl.u32 %v1086, 7
        %v1088 = vsub.s32 1, %v1087
        %v1089 = vrot.slane %v1071, %v1088
        %v1090 = vsel %vm562, %v1089, %v1084
        %v1091 = vsel %vm563, %v1089, %v1085
        %v1092 = vld [vmem:[#allocation13] sm:$0xff]
        %v1093 = vld [vmem:[#allocation13 + $0x8] sm:$0xff]
        %s1094 = scalar_lea.vmem [#allocation13], 16
        %v1095 = vld [vmem:[%s1094] sm:$0xff]
        %v1096 = vld [vmem:[%s1094 + $0x8] sm:$0xff]
        %vm1097 = vcmask 130048
        %v1099 = vsel %vm1097, %v842, 0
        %v1102 = vsel %vm1097, %v843, 0
        %1104 = vmatprep.subr.mxu0 0.0
        %1105 = vmatpush1.msra.mxu0 %v1095
        %1106 = vmatprep.subr.mxu0 0.0
        %1107 = vmatpush1.msra.mxu0 %v1096
        %1108 = vmatprep.subr.mxu0 0.0
        %1109 = vmatpush1.msra.mxu0 0.0
        %1110 = vmatprep.subr.mxu0 0.0
        %1111 = vmatpush1.msra.mxu0 0.0
        %1112 = vmatprep.subr.mxu0 0.0
        %1113 = vmatpush1.msra.mxu0 0.0
        %1114 = vmatprep.subr.mxu0 0.0
        %1115 = vmatpush1.msra.mxu0 0.0
        %1116 = vmatprep.subr.mxu0 0.0
        %1117 = vmatpush1.msra.mxu0 0.0
        %1118 = vmatprep.subr.mxu0 0.0
        %1119 = vmatpush1.msra.mxu0 0.0
        %1120 = vmatprep.subr.mxu0 0.0
        %1121 = vmatpush1.msra.mxu0 0.0
        %1122 = vmatprep.subr.mxu0 0.0
        %1123 = vmatpush1.msra.mxu0 0.0
        %1124 = vmatprep.subr.mxu0 0.0
        %1125 = vmatpush1.msra.mxu0 0.0
        %1126 = vmatprep.subr.mxu0 0.0
        %1127 = vmatpush1.msra.mxu0 0.0
        %1128 = vmatprep.subr.mxu0 0.0
        %1129 = vmatpush1.msra.mxu0 0.0
        %1130 = vmatprep.subr.mxu0 0.0
        %1131 = vmatpush1.msra.mxu0 0.0
        %1132 = vmatprep.subr.mxu0 0.0
        %1133 = vmatpush1.msra.mxu0 0.0
        %1134 = vmatprep.subr.mxu0 0.0
        %1135 = vmatpush1.msra.mxu0 0.0
        %1136 = vmatprep.subr.mxu0 0.0
        %1137 = vmatpush1.msra.mxu0 0.0
        %1138 = vmatprep.subr.mxu0 0.0
        %1139 = vmatpush1.msra.mxu0 0.0
        %1140 = vmatprep.subr.mxu0 0.0
        %1141 = vmatpush1.msra.mxu0 0.0
        %1142 = vmatprep.subr.mxu0 0.0
        %1143 = vmatpush1.msra.mxu0 0.0
        %1144 = vmatprep.subr.mxu0 0.0
        %1145 = vmatpush1.msra.mxu0 0.0
        %1146 = vmatprep.subr.mxu0 0.0
        %1147 = vmatpush1.msra.mxu0 0.0
        %1148 = vmatprep.subr.mxu0 0.0
        %1149 = vmatpush1.msra.mxu0 0.0
        %1150 = vmatprep.subr.mxu0 0.0
        %1151 = vmatpush1.msra.mxu0 0.0
        %1152 = vmatprep.subr.mxu0 0.0
        %1153 = vmatpush1.msra.mxu0 0.0
        %1154 = vmatprep.subr.mxu0 0.0
        %1155 = vmatpush1.msra.mxu0 0.0
        %1156 = vmatprep.subr.mxu0 0.0
        %1157 = vmatpush1.msra.mxu0 0.0
        %1158 = vmatprep.subr.mxu0 0.0
        %1159 = vmatpush1.msra.mxu0 0.0
        %1160 = vmatprep.subr.mxu0 0.0
        %1161 = vmatpush1.msra.mxu0 0.0
        %1162 = vmatprep.subr.mxu0 0.0
        %1163 = vmatpush1.msra.mxu0 0.0
        %1164 = vmatprep.subr.mxu0 0.0
        %1165 = vmatpush1.msra.mxu0 0.0
        %1166 = vmatprep.subr.mxu0 0.0
        %1167 = vmatpush1.msra.mxu0 0.0
        %1168 = vmatprep.mubr.f32.mxu0 0.0
        %1169 = vmatmul.mubr.f32.gmra.mrb[0].mxu0 %v1099
        %v1170 = vpop.f32.mrb[0].mxu0
        %v1171 = vadd.f32 0.0, %v1170
        %v1172 = vpop.f32.mrb[0].mxu0
        %1173 = vmatprep.mubr.f32.mxu0 0.0
        %1174 = vmatmul.mubr.f32.gmra.mrb[0].mxu0 %v1102
        %v1175 = vpop.f32.mrb[0].mxu0
        %v1176 = vadd.f32 0.0, %v1175
        %v1177 = vpop.f32.mrb[0].mxu0
        %1178 = vdwg.mxu0
        %v1180 = vsel %vm1097, %v1080, 0
        %v1183 = vsel %vm1097, %v1081, 0
        %1185 = vmatprep.subr.mxu0 0.0
        %1186 = vmatpush1.msra.mxu0 %v1092
        %1187 = vmatprep.subr.mxu0 0.0
        %1188 = vmatpush1.msra.mxu0 %v1093
        %1189 = vmatprep.subr.mxu0 0.0
        %1190 = vmatpush1.msra.mxu0 0.0
        %1191 = vmatprep.subr.mxu0 0.0
        %1192 = vmatpush1.msra.mxu0 0.0
        %1193 = vmatprep.subr.mxu0 0.0
        %1194 = vmatpush1.msra.mxu0 0.0
        %1195 = vmatprep.subr.mxu0 0.0
        %1196 = vmatpush1.msra.mxu0 0.0
        %1197 = vmatprep.subr.mxu0 0.0
        %1198 = vmatpush1.msra.mxu0 0.0
        %1199 = vmatprep.subr.mxu0 0.0
        %1200 = vmatpush1.msra.mxu0 0.0
        %1201 = vmatprep.subr.mxu0 0.0
        %1202 = vmatpush1.msra.mxu0 0.0
        %1203 = vmatprep.subr.mxu0 0.0
        %1204 = vmatpush1.msra.mxu0 0.0
        %1205 = vmatprep.subr.mxu0 0.0
        %1206 = vmatpush1.msra.mxu0 0.0
        %1207 = vmatprep.subr.mxu0 0.0
        %1208 = vmatpush1.msra.mxu0 0.0
        %1209 = vmatprep.subr.mxu0 0.0
        %1210 = vmatpush1.msra.mxu0 0.0
        %1211 = vmatprep.subr.mxu0 0.0
        %1212 = vmatpush1.msra.mxu0 0.0
        %1213 = vmatprep.subr.mxu0 0.0
        %1214 = vmatpush1.msra.mxu0 0.0
        %1215 = vmatprep.subr.mxu0 0.0
        %1216 = vmatpush1.msra.mxu0 0.0
        %1217 = vmatprep.subr.mxu0 0.0
        %1218 = vmatpush1.msra.mxu0 0.0
        %1219 = vmatprep.subr.mxu0 0.0
        %1220 = vmatpush1.msra.mxu0 0.0
        %1221 = vmatprep.subr.mxu0 0.0
        %1222 = vmatpush1.msra.mxu0 0.0
        %1223 = vmatprep.subr.mxu0 0.0
        %1224 = vmatpush1.msra.mxu0 0.0
        %1225 = vmatprep.subr.mxu0 0.0
        %1226 = vmatpush1.msra.mxu0 0.0
        %1227 = vmatprep.subr.mxu0 0.0
        %1228 = vmatpush1.msra.mxu0 0.0
        %1229 = vmatprep.subr.mxu0 0.0
        %1230 = vmatpush1.msra.mxu0 0.0
        %1231 = vmatprep.subr.mxu0 0.0
        %1232 = vmatpush1.msra.mxu0 0.0
        %1233 = vmatprep.subr.mxu0 0.0
        %1234 = vmatpush1.msra.mxu0 0.0
        %1235 = vmatprep.subr.mxu0 0.0
        %1236 = vmatpush1.msra.mxu0 0.0
        %1237 = vmatprep.subr.mxu0 0.0
        %1238 = vmatpush1.msra.mxu0 0.0
        %1239 = vmatprep.subr.mxu0 0.0
        %1240 = vmatpush1.msra.mxu0 0.0
        %1241 = vmatprep.subr.mxu0 0.0
        %1242 = vmatpush1.msra.mxu0 0.0
        %1243 = vmatprep.subr.mxu0 0.0
        %1244 = vmatpush1.msra.mxu0 0.0
        %1245 = vmatprep.subr.mxu0 0.0
        %1246 = vmatpush1.msra.mxu0 0.0
        %1247 = vmatprep.subr.mxu0 0.0
        %1248 = vmatpush1.msra.mxu0 0.0
        %1249 = vmatprep.mubr.f32.mxu0 0.0
        %1250 = vmatmul.mubr.f32.gmra.mrb[0].mxu0 %v1180
        %v1251 = vpop.f32.mrb[0].mxu0
        %v1252 = vadd.f32 %v1171, %v1251
        %v1253 = vpop.f32.mrb[0].mxu0
        %1254 = vmatprep.mubr.f32.mxu0 0.0
        %1255 = vmatmul.mubr.f32.gmra.mrb[0].mxu0 %v1183
        %v1256 = vpop.f32.mrb[0].mxu0
        %v1257 = vadd.f32 %v1176, %v1256
        %v1258 = vpop.f32.mrb[0].mxu0
        %1259 = vdwg.mxu0
        %s1260 = scalar_lea.vmem [#allocation13], 32
        %v1261 = vld [vmem:[%s1260] sm:$0xff]
        %v1262 = vld [vmem:[%s1260 + $0x8] sm:$0xff]
        %v1264 = vsel %vm1097, %v1090, 0
        %v1267 = vsel %vm1097, %v1091, 0
        %1269 = vmatprep.subr.mxu0 0.0
        %1270 = vmatpush1.msra.mxu0 %v1261
        %1271 = vmatprep.subr.mxu0 0.0
        %1272 = vmatpush1.msra.mxu0 %v1262
        %1273 = vmatprep.subr.mxu0 0.0
        %1274 = vmatpush1.msra.mxu0 0.0
        %1275 = vmatprep.subr.mxu0 0.0
        %1276 = vmatpush1.msra.mxu0 0.0
        %1277 = vmatprep.subr.mxu0 0.0
        %1278 = vmatpush1.msra.mxu0 0.0
        %1279 = vmatprep.subr.mxu0 0.0
        %1280 = vmatpush1.msra.mxu0 0.0
        %1281 = vmatprep.subr.mxu0 0.0
        %1282 = vmatpush1.msra.mxu0 0.0
        %1283 = vmatprep.subr.mxu0 0.0
        %1284 = vmatpush1.msra.mxu0 0.0
        %1285 = vmatprep.subr.mxu0 0.0
        %1286 = vmatpush1.msra.mxu0 0.0
        %1287 = vmatprep.subr.mxu0 0.0
        %1288 = vmatpush1.msra.mxu0 0.0
        %1289 = vmatprep.subr.mxu0 0.0
        %1290 = vmatpush1.msra.mxu0 0.0
        %1291 = vmatprep.subr.mxu0 0.0
        %1292 = vmatpush1.msra.mxu0 0.0
        %1293 = vmatprep.subr.mxu0 0.0
        %1294 = vmatpush1.msra.mxu0 0.0
        %1295 = vmatprep.subr.mxu0 0.0
        %1296 = vmatpush1.msra.mxu0 0.0
        %1297 = vmatprep.subr.mxu0 0.0
        %1298 = vmatpush1.msra.mxu0 0.0
        %1299 = vmatprep.subr.mxu0 0.0
        %1300 = vmatpush1.msra.mxu0 0.0
        %1301 = vmatprep.subr.mxu0 0.0
        %1302 = vmatpush1.msra.mxu0 0.0
        %1303 = vmatprep.subr.mxu0 0.0
        %1304 = vmatpush1.msra.mxu0 0.0
        %1305 = vmatprep.subr.mxu0 0.0
        %1306 = vmatpush1.msra.mxu0 0.0
        %1307 = vmatprep.subr.mxu0 0.0
        %1308 = vmatpush1.msra.mxu0 0.0
        %1309 = vmatprep.subr.mxu0 0.0
        %1310 = vmatpush1.msra.mxu0 0.0
        %1311 = vmatprep.subr.mxu0 0.0
        %1312 = vmatpush1.msra.mxu0 0.0
        %1313 = vmatprep.subr.mxu0 0.0
        %1314 = vmatpush1.msra.mxu0 0.0
        %1315 = vmatprep.subr.mxu0 0.0
        %1316 = vmatpush1.msra.mxu0 0.0
        %1317 = vmatprep.subr.mxu0 0.0
        %1318 = vmatpush1.msra.mxu0 0.0
        %1319 = vmatprep.subr.mxu0 0.0
        %1320 = vmatpush1.msra.mxu0 0.0
        %1321 = vmatprep.subr.mxu0 0.0
        %1322 = vmatpush1.msra.mxu0 0.0
        %1323 = vmatprep.subr.mxu0 0.0
        %1324 = vmatpush1.msra.mxu0 0.0
        %1325 = vmatprep.subr.mxu0 0.0
        %1326 = vmatpush1.msra.mxu0 0.0
        %1327 = vmatprep.subr.mxu0 0.0
        %1328 = vmatpush1.msra.mxu0 0.0
        %1329 = vmatprep.subr.mxu0 0.0
        %1330 = vmatpush1.msra.mxu0 0.0
        %1331 = vmatprep.subr.mxu0 0.0
        %1332 = vmatpush1.msra.mxu0 0.0
        %1333 = vmatprep.mubr.f32.mxu0 0.0
        %1334 = vmatmul.mubr.f32.gmra.mrb[0].mxu0 %v1264
        %v1335 = vpop.f32.mrb[0].mxu0
        %v1336 = vadd.f32 0.0, %v1335
        %v1337 = vpop.f32.mrb[0].mxu0
        %1338 = vmatprep.mubr.f32.mxu0 0.0
        %1339 = vmatmul.mubr.f32.gmra.mrb[0].mxu0 %v1267
        %v1340 = vpop.f32.mrb[0].mxu0
        %v1341 = vadd.f32 0.0, %v1340
        %v1342 = vpop.f32.mrb[0].mxu0
        %1343 = vdwg.mxu0
        %v1344 = vadd.f32 %v1252, %v1336
        %v1345 = vadd.f32 %v1257, %v1341
        %v1346 = vld [vmem:[#allocation14] sm:$0x1]
        %v1348 = vlaneseq
        %v1349 = vshrl.u32 %v1348, 7
        %v1350 = vsub.s32 0, %v1349
        %v1351 = vrot.slane %v1346, %v1350
        %v1353 = vadd.f32 %v1344, %v1351
        %v1354 = vadd.f32 %v1345, %v1351
        %v1355 = vmul.f32 %v1353, %v833
        %v1356 = vmul.f32 %v1354, %v838
        %v1357 = vadd.f32 %v1355, %v525
        %v1358 = vadd.f32 %v1356, %v526
        %v1359 = vmax.f32 %v1357, 0.0
        %v1360 = vmax.f32 %v1358, 0.0
        %1361 = vst.msk [vmem:[%s521] sm:$0xff] %vm573, %v1359
        %1362 = vst.msk [vmem:[%s521 + $0x8] sm:$0xff] %vm573, %v1360
        %s1363 = sand.u32 %s251, 1
        %s1364 = scalar_lea.sflag [#allocation4], %s1363
        %s1365 = sand.u32 %s251, 1
        %s1366 = smul.addr %s1365, 16
        %s1367 = scalar_lea.vmem [#allocation16], %s1366
        // Predicated region
        $region85: #{tpu_custom_call.1} parent=51 // pred_check
          %p1368 = pneg %p261
        $region86: #{tpu_custom_call.1} parent=51 // pred_check_branch
          %1370 = sbr.rel (%p1368) target = $region88
        $region87: #{tpu_custom_call.1} parent=51 // pred_region
          %s1371 = smul.u32 2, %s38
          %s1373 = ssub.s32 256, 256
          %1374 = vsyncadd %s1364, %s1373
          %s1375 = smul.addr %s37, 4
          %s1376 = sadd.s32 %s1371, %s1375
          %s1377 = smul.addr %s1376, 128
          %s1378 = scalar_lea.hbm %s8, %s1377
          %s1379 = sshll.u32 %s1367, 4
          %s1380 = int_to_ptr.vmem [resolvable:$true] %s1379
          %1385 = dma.vmem_to_hbm [thread:$0]  %s1380, 256, %s1378, %s1364, 128, 128, 8
        $region88: #{tpu_custom_call.1} parent=51 // pred_fallthru
          _
      $region52: #{tpu_custom_call.1} parent=5 // pred_fallthru
        _
      %p1386 = scmp.le.s32.totalorder 2, %s28
      // Predicated region
      $region89: #{tpu_custom_call.1} parent=5 // pred_check
        %p1387 = pneg %p1386
      $region90: #{tpu_custom_call.1} parent=5 // pred_check_branch
        %1389 = sbr.rel (%p1387) target = $region92
      $region91: #{tpu_custom_call.1} parent=5 // pred_region
        %s1390 = ssub.s32 %s28, 2
        // Predicated region
        $region93: #{tpu_custom_call.1} parent=91 // pred_check
          %p1391 = pneg %p267
        $region94: #{tpu_custom_call.1} parent=91 // pred_check_branch
          %1393 = sbr.rel (%p1391) target = $region96
        $region95: #{tpu_custom_call.1} parent=91 // pred_region
          %s1394 = sand.u32 %s252, 1
          %s1395 = scalar_lea.sflag [#allocation4], %s1394
          %s1396 = sand.u32 %s252, 1
          %s1397 = smul.addr %s1396, 16
          %s1398 = scalar_lea.vmem [#allocation16], %s1397
          %1399 = dma.done %s1395, 256
        $region96: #{tpu_custom_call.1} parent=91 // pred_fallthru
          _
      $region92: #{tpu_custom_call.1} parent=5 // pred_fallthru
        _
    $region6: #{tpu_custom_call.1} parent=1 // loop_footer
      %s32 = sadd.s32 1, %s28
    $region7: #{tpu_custom_call.1} parent=1 // loop_footer_branch
      %27 = sbr.rel target = $region3
    $region8: #{tpu_custom_call.1} parent=1 // loop_exit
      _
    %1400 = vsyncpa [#allocation3], 1
    %s1401 = scalar_lea.sflag [#allocation3], 1
    %1402 = vsyncpa %s1401, 1
    %1403 = vsyncpa [#allocation6], 1
    %s1404 = scalar_lea.sflag [#allocation6], 1
    %1405 = vsyncpa %s1404, 1
    %1406 = vsyncpa [#allocation9], 1
    %s1407 = scalar_lea.sflag [#allocation9], 1
    %1408 = vsyncpa %s1407, 1
    %1409 = vsyncpa [#allocation12], 1
    %1410 = vsyncpa [#allocation15], 1
    %1411 = vsyncpa [#allocation4], 1
    %s1412 = scalar_lea.sflag [#allocation4], 1
    %1413 = vsyncpa %s1412, 1

</llo_original>
